<compile_context>
chip_gen: v7x
topology: tpu7x:2x2x1
jax: 0.10.0
libtpu: 0.0.40
codegen_flags: <defaults>
</compile_context>

<pallas_src>
import jax
import jax.numpy as jnp
from jax.experimental import pallas as pl
from jax.experimental.pallas import tpu as pltpu


_K1D = (0.05, 0.25, 0.4, 0.25, 0.05)  # separable 5-tap Gaussian (outer product = 5x5)


def _conv_gauss(img, row_lo, row_hi, col_lo, col_hi):
    """Separable 5x5 Gaussian blur with replicate padding on a (P, H, W) tile.

    Shifted taps come from pltpu.roll (XLU slot, idle in this VALU-bound kernel)
    so operands stay lane/sublane aligned; the circular wrap-around is corrected
    with precomputed edge masks, which reproduces replicate padding exactly.
    The symmetric kernel is folded to 3 multiplies per 5-tap pass.
    """
    _, H, W = img.shape

    def blur_1d(t, size, axis, lo_mask, hi_mask):
        # t[i-1], t[i-2] with replicate at the low edge.
        m1 = jnp.where(lo_mask, pltpu.roll(t, 1, axis=axis), t)
        m2 = jnp.where(lo_mask, pltpu.roll(m1, 1, axis=axis), m1)
        # t[i+1], t[i+2] with replicate at the high edge (positive shift = size-1).
        p1 = jnp.where(hi_mask, pltpu.roll(t, size - 1, axis=axis), t)
        p2 = jnp.where(hi_mask, pltpu.roll(p1, size - 1, axis=axis), p1)
        return 0.4 * t + 0.25 * (m1 + p1) + 0.05 * (m2 + p2)

    h = blur_1d(img, W, 2, col_lo, col_hi)   # horizontal (lane) pass
    return blur_1d(h, H, 1, row_lo, row_hi)  # vertical (sublane) pass


def _laplacian(img, even, row_lo, row_hi, col_lo, col_hi):
    """current - conv_gauss(4 * even-subsampled conv_gauss(current))."""
    filtered = _conv_gauss(img, row_lo, row_hi, col_lo, col_hi)
    # new_filter[::2, ::2] = 4*filtered[::2, ::2], zero elsewhere (pure VPU select).
    new_filter = jnp.where(even, filtered * 4.0, 0.0)
    return img - _conv_gauss(new_filter, row_lo, row_hi, col_lo, col_hi)


def _edge_loss_kernel(x_ref, y_ref, o_ref):
    pt, H, W = x_ref.shape

    # Shared 2D masks: built once per step, reused by both laplacian chains.
    rows = jax.lax.broadcasted_iota(jnp.int32, (H, W), 0)
    cols = jax.lax.broadcasted_iota(jnp.int32, (H, W), 1)
    row_lo = rows >= 1
    row_hi = rows <= H - 2
    col_lo = cols >= 1
    col_hi = cols <= W - 2
    even = jnp.logical_and((rows & 1) == 0, (cols & 1) == 0)

    x = x_ref[...].astype(jnp.float32)     # upcast in VMEM (cheap VPU op)
    y = y_ref[...].astype(jnp.float32)
    lap_x = _laplacian(x, even, row_lo, row_hi, col_lo, col_hi)
    lap_y = _laplacian(y, even, row_lo, row_hi, col_lo, col_hi)
    diff = jnp.abs(lap_x - lap_y)          # (pt, H, W)

    # Lane-dense per-step partial sum: plane reduce (vreg adds) + sublane reduce
    # (XLU). The final 128-lane reduce and scaling run in the wrapper, so each
    # grid step is fully independent -> grid axis can be "parallel" (v7x 2 TCs).
    part = jnp.sum(jnp.sum(diff, axis=0, keepdims=True), axis=1, keepdims=True)
    o_ref[...] = part                      # block shape (1, 1, W)


def _vmem_limit_bytes():
    """Scoped-VMEM limit ≈ 3/4 of physical VMEM (48 MiB on v7x, 96 MiB on v5e/v6e)."""
    try:
        cap = getattr(pltpu.get_tpu_info(), "vmem_capacity_bytes", None)
    except Exception:                       # interpret mode / AOT on CPU, etc.
        cap = None
    if not cap:
        cap = 64 << 20                      # conservative: v7x per-TensorCore VMEM
    return min(int(cap * 3 // 4), 100 << 20)


def _pick_plane_tile(planes, H, W, itemsize, budget_bytes):
    """Largest divisor of `planes` whose per-step working set fits the VMEM budget.

    Per-plane working set per grid step:
      * 2 streamed inputs x 2 pipeline buffers x native itemsize
      * ~12 live f32 (H, W) intermediates across the two laplacian chains
        (blur taps, masked subsample, second blur, laplacians, |diff|).
    """
    per_plane = H * W * (4 * itemsize + 12 * 4)
    max_pt = max(1, budget_bytes // max(per_plane, 1))
    if planes >= 2:
        # Keep >= 2 grid steps so the "parallel" axis can be split across
        # TensorCores on v7x; per-step overhead (~0.35us) is negligible.
        max_pt = min(max_pt, (planes + 1) // 2)
    pt = 1
    for d in range(1, planes + 1):
        if planes % d == 0 and d <= max_pt:
            pt = d
    return pt


def edge_loss(x, y, loss_weight=1.0):
    """Pallas implementation of EdgeLoss.forward(x, y) (weight=None, mean reduction)."""
    assert x.shape == y.shape and x.ndim == 4, "expected NCHW inputs of equal shape"
    B, C, H, W = x.shape
    planes = B * C
    # Free row-major reshape; inputs stay in their native dtype (no pad / cast copy).
    x3 = x.reshape(planes, H, W)
    y3 = y.reshape(planes, H, W)

    vmem_limit = _vmem_limit_bytes()
    pt = _pick_plane_tile(planes, H, W, x.dtype.itemsize, budget_bytes=vmem_limit)
    nb = planes // pt

    partials = pl.pallas_call(
        _edge_loss_kernel,
        out_shape=jax.ShapeDtypeStruct((nb, 1, W), jnp.float32),
        grid_spec=pltpu.PrefetchScalarGridSpec(
            num_scalar_prefetch=0,
            grid=(nb,),
            in_specs=[
                pl.BlockSpec((pt, H, W), lambda i: (i, 0, 0)),
                pl.BlockSpec((pt, H, W), lambda i: (i, 0, 0)),
            ],
            out_specs=pl.BlockSpec((1, 1, W), lambda i: (i, 0, 0)),
        ),
        compiler_params=pltpu.CompilerParams(
            dimension_semantics=("parallel",),   # independent per-step partials
            vmem_limit_bytes=vmem_limit,
        ),
    )(x3, y3)

    inv_count = 1.0 / float(planes * H * W)
    return jnp.sum(partials) * jnp.float32(inv_count * float(loss_weight))


# ---------------------------------------------------------------------------
# Pure-JAX reference (mirrors the PyTorch module) for correctness checking.
# ---------------------------------------------------------------------------
def _conv_gauss_ref(img):
    k1 = jnp.array(_K1D, jnp.float32)
    k2 = jnp.outer(k1, k1)
    H, W = img.shape[2], img.shape[3]
    p = jnp.pad(img, ((0, 0), (0, 0), (2, 2), (2, 2)), mode="edge")
    out = jnp.zeros_like(img)
    for a in range(5):
        for b in range(5):
            out = out + k2[a, b] * p[:, :, a:a + H, b:b + W]
    return out


def _laplacian_ref(img):
    filtered = _conv_gauss_ref(img)
    new_filter = jnp.zeros_like(filtered)
    new_filter = new_filter.at[:, :, ::2, ::2].set(filtered[:, :, ::2, ::2] * 4.0)
    return img - _conv_gauss_ref(new_filter)


def edge_loss_ref(x, y, loss_weight=1.0):
    x = x.astype(jnp.float32)
    y = y.astype(jnp.float32)
    return jnp.mean(jnp.abs(_laplacian_ref(x) - _laplacian_ref(y))) * loss_weight


if __name__ == "__main__":
    key = jax.random.PRNGKey(0)
    kx, ky = jax.random.split(key)
    # 3 channels: the module's depthwise Gaussian kernel is repeat(3, 1, 1, 1).
    # W=128 keeps the lane axis fully occupied/aligned for the roll-based taps.
    x = jax.random.normal(kx, (2, 3, 32, 128), dtype=jnp.float32)
    y = jax.random.normal(ky, (2, 3, 32, 128), dtype=jnp.float32)

    got = jax.block_until_ready(edge_loss(x, y, loss_weight=1.0))
    want = jax.block_until_ready(edge_loss_ref(x, y, loss_weight=1.0))

    if jnp.allclose(got, want, rtol=1e-4, atol=1e-6):
        print("KERNEL_OK")
    else:
        print(f"MISMATCH: pallas={got} ref={want}")
</pallas_src>

<mosaic_0001>
module attributes {stable_mosaic.version = 11 : i64} {
  func.func @_edge_loss_kernel(%arg0: i32, %arg1: memref<3x32x128xf32, #tpu.memory_space<vmem>>, %arg2: memref<3x32x128xf32, #tpu.memory_space<vmem>>, %arg3: memref<1x1x128xf32, #tpu.memory_space<vmem>>) attributes {dimension_semantics = [#tpu.dimension_semantics<parallel>], iteration_bounds = array<i64: 2>, scalar_prefetch = 0 : i64, scratch_operands = 0 : i64, tpu.core_type = #tpu.core_type<tc>, window_params = [{transform_indices = @transform_0, window_bounds = array<i64: 3, 32, 128>}, {transform_indices = @transform_1, window_bounds = array<i64: 3, 32, 128>}, {transform_indices = @transform_2, window_bounds = array<i64: 1, 1, 128>}]} {
    %0 = tpu.iota {dimensions = array<i32: 0>} : vector<32x128xi32>
    %1 = tpu.iota {dimensions = array<i32: 1>} : vector<32x128xi32>
    %c1_i32 = arith.constant 1 : i32
    %2 = vector.broadcast %c1_i32 : i32 to vector<32x128xi32>
    %3 = arith.cmpi sge, %0, %2 : vector<32x128xi32>
    %c30_i32 = arith.constant 30 : i32
    %4 = vector.broadcast %c30_i32 : i32 to vector<32x128xi32>
    %5 = arith.cmpi sle, %0, %4 : vector<32x128xi32>
    %c1_i32_0 = arith.constant 1 : i32
    %6 = vector.broadcast %c1_i32_0 : i32 to vector<32x128xi32>
    %7 = arith.cmpi sge, %1, %6 : vector<32x128xi32>
    %c126_i32 = arith.constant 126 : i32
    %8 = vector.broadcast %c126_i32 : i32 to vector<32x128xi32>
    %9 = arith.cmpi sle, %1, %8 : vector<32x128xi32>
    %c1_i32_1 = arith.constant 1 : i32
    %10 = vector.broadcast %c1_i32_1 : i32 to vector<32x128xi32>
    %11 = arith.andi %0, %10 : vector<32x128xi32>
    %c0_i32 = arith.constant 0 : i32
    %12 = vector.broadcast %c0_i32 : i32 to vector<32x128xi32>
    %13 = arith.cmpi eq, %11, %12 : vector<32x128xi32>
    %c1_i32_2 = arith.constant 1 : i32
    %14 = vector.broadcast %c1_i32_2 : i32 to vector<32x128xi32>
    %15 = arith.andi %1, %14 : vector<32x128xi32>
    %c0_i32_3 = arith.constant 0 : i32
    %16 = vector.broadcast %c0_i32_3 : i32 to vector<32x128xi32>
    %17 = arith.cmpi eq, %15, %16 : vector<32x128xi32>
    %18 = arith.andi %13, %17 : vector<32x128xi1>
    %c0 = arith.constant 0 : index
    %c0_4 = arith.constant 0 : index
    %c0_5 = arith.constant 0 : index
    %19 = vector.load %arg1[%c0, %c0_4, %c0_5] : memref<3x32x128xf32, #tpu.memory_space<vmem>>, vector<3x32x128xf32>
    %c0_6 = arith.constant 0 : index
    %c0_7 = arith.constant 0 : index
    %c0_8 = arith.constant 0 : index
    %20 = vector.load %arg2[%c0_6, %c0_7, %c0_8] : memref<3x32x128xf32, #tpu.memory_space<vmem>>, vector<3x32x128xf32>
    %c1_i32_9 = arith.constant 1 : i32
    %21 = tpu.dynamic_rotate %19 by %c1_i32_9 dim 2 : vector<3x32x128xf32>, i32 -> vector<3x32x128xf32>
    %22 = vector.shape_cast %7 : vector<32x128xi1> to vector<1x32x128xi1>
    %23 = vector.broadcast %22 : vector<1x32x128xi1> to vector<3x32x128xi1>
    %24 = arith.select %23, %21, %19 : vector<3x32x128xi1>, vector<3x32x128xf32>
    %c1_i32_10 = arith.constant 1 : i32
    %25 = tpu.dynamic_rotate %24 by %c1_i32_10 dim 2 : vector<3x32x128xf32>, i32 -> vector<3x32x128xf32>
    %26 = vector.shape_cast %7 : vector<32x128xi1> to vector<1x32x128xi1>
    %27 = vector.broadcast %26 : vector<1x32x128xi1> to vector<3x32x128xi1>
    %28 = arith.select %27, %25, %24 : vector<3x32x128xi1>, vector<3x32x128xf32>
    %c127_i32 = arith.constant 127 : i32
    %29 = tpu.dynamic_rotate %19 by %c127_i32 dim 2 : vector<3x32x128xf32>, i32 -> vector<3x32x128xf32>
    %30 = vector.shape_cast %9 : vector<32x128xi1> to vector<1x32x128xi1>
    %31 = vector.broadcast %30 : vector<1x32x128xi1> to vector<3x32x128xi1>
    %32 = arith.select %31, %29, %19 : vector<3x32x128xi1>, vector<3x32x128xf32>
    %c127_i32_11 = arith.constant 127 : i32
    %33 = tpu.dynamic_rotate %32 by %c127_i32_11 dim 2 : vector<3x32x128xf32>, i32 -> vector<3x32x128xf32>
    %34 = vector.shape_cast %9 : vector<32x128xi1> to vector<1x32x128xi1>
    %35 = vector.broadcast %34 : vector<1x32x128xi1> to vector<3x32x128xi1>
    %36 = arith.select %35, %33, %32 : vector<3x32x128xi1>, vector<3x32x128xf32>
    %cst = arith.constant 4.000000e-01 : f32
    %37 = vector.broadcast %cst : f32 to vector<3x32x128xf32>
    %38 = arith.mulf %37, %19 : vector<3x32x128xf32>
    %39 = arith.addf %24, %32 : vector<3x32x128xf32>
    %cst_12 = arith.constant 2.500000e-01 : f32
    %40 = vector.broadcast %cst_12 : f32 to vector<3x32x128xf32>
    %41 = arith.mulf %40, %39 : vector<3x32x128xf32>
    %42 = arith.addf %38, %41 : vector<3x32x128xf32>
    %43 = arith.addf %28, %36 : vector<3x32x128xf32>
    %cst_13 = arith.constant 5.000000e-02 : f32
    %44 = vector.broadcast %cst_13 : f32 to vector<3x32x128xf32>
    %45 = arith.mulf %44, %43 : vector<3x32x128xf32>
    %46 = arith.addf %42, %45 : vector<3x32x128xf32>
    %c1_i32_14 = arith.constant 1 : i32
    %47 = tpu.dynamic_rotate %46 by %c1_i32_14 dim 1 : vector<3x32x128xf32>, i32 -> vector<3x32x128xf32>
    %48 = vector.shape_cast %3 : vector<32x128xi1> to vector<1x32x128xi1>
    %49 = vector.broadcast %48 : vector<1x32x128xi1> to vector<3x32x128xi1>
    %50 = arith.select %49, %47, %46 : vector<3x32x128xi1>, vector<3x32x128xf32>
    %c1_i32_15 = arith.constant 1 : i32
    %51 = tpu.dynamic_rotate %50 by %c1_i32_15 dim 1 : vector<3x32x128xf32>, i32 -> vector<3x32x128xf32>
    %52 = vector.shape_cast %3 : vector<32x128xi1> to vector<1x32x128xi1>
    %53 = vector.broadcast %52 : vector<1x32x128xi1> to vector<3x32x128xi1>
    %54 = arith.select %53, %51, %50 : vector<3x32x128xi1>, vector<3x32x128xf32>
    %c31_i32 = arith.constant 31 : i32
    %55 = tpu.dynamic_rotate %46 by %c31_i32 dim 1 : vector<3x32x128xf32>, i32 -> vector<3x32x128xf32>
    %56 = vector.shape_cast %5 : vector<32x128xi1> to vector<1x32x128xi1>
    %57 = vector.broadcast %56 : vector<1x32x128xi1> to vector<3x32x128xi1>
    %58 = arith.select %57, %55, %46 : vector<3x32x128xi1>, vector<3x32x128xf32>
    %c31_i32_16 = arith.constant 31 : i32
    %59 = tpu.dynamic_rotate %58 by %c31_i32_16 dim 1 : vector<3x32x128xf32>, i32 -> vector<3x32x128xf32>
    %60 = vector.shape_cast %5 : vector<32x128xi1> to vector<1x32x128xi1>
    %61 = vector.broadcast %60 : vector<1x32x128xi1> to vector<3x32x128xi1>
    %62 = arith.select %61, %59, %58 : vector<3x32x128xi1>, vector<3x32x128xf32>
    %cst_17 = arith.constant 4.000000e-01 : f32
    %63 = vector.broadcast %cst_17 : f32 to vector<3x32x128xf32>
    %64 = arith.mulf %63, %46 : vector<3x32x128xf32>
    %65 = arith.addf %50, %58 : vector<3x32x128xf32>
    %cst_18 = arith.constant 2.500000e-01 : f32
    %66 = vector.broadcast %cst_18 : f32 to vector<3x32x128xf32>
    %67 = arith.mulf %66, %65 : vector<3x32x128xf32>
    %68 = arith.addf %64, %67 : vector<3x32x128xf32>
    %69 = arith.addf %54, %62 : vector<3x32x128xf32>
    %cst_19 = arith.constant 5.000000e-02 : f32
    %70 = vector.broadcast %cst_19 : f32 to vector<3x32x128xf32>
    %71 = arith.mulf %70, %69 : vector<3x32x128xf32>
    %72 = arith.addf %68, %71 : vector<3x32x128xf32>
    %cst_20 = arith.constant 4.000000e+00 : f32
    %73 = vector.broadcast %cst_20 : f32 to vector<3x32x128xf32>
    %74 = arith.mulf %72, %73 : vector<3x32x128xf32>
    %cst_21 = arith.constant 0.000000e+00 : f32
    %75 = vector.shape_cast %18 : vector<32x128xi1> to vector<1x32x128xi1>
    %76 = vector.broadcast %75 : vector<1x32x128xi1> to vector<3x32x128xi1>
    %77 = vector.broadcast %cst_21 : f32 to vector<3x32x128xf32>
    %78 = arith.select %76, %74, %77 : vector<3x32x128xi1>, vector<3x32x128xf32>
    %c1_i32_22 = arith.constant 1 : i32
    %79 = tpu.dynamic_rotate %78 by %c1_i32_22 dim 2 : vector<3x32x128xf32>, i32 -> vector<3x32x128xf32>
    %80 = vector.shape_cast %7 : vector<32x128xi1> to vector<1x32x128xi1>
    %81 = vector.broadcast %80 : vector<1x32x128xi1> to vector<3x32x128xi1>
    %82 = arith.select %81, %79, %78 : vector<3x32x128xi1>, vector<3x32x128xf32>
    %c1_i32_23 = arith.constant 1 : i32
    %83 = tpu.dynamic_rotate %82 by %c1_i32_23 dim 2 : vector<3x32x128xf32>, i32 -> vector<3x32x128xf32>
    %84 = vector.shape_cast %7 : vector<32x128xi1> to vector<1x32x128xi1>
    %85 = vector.broadcast %84 : vector<1x32x128xi1> to vector<3x32x128xi1>
    %86 = arith.select %85, %83, %82 : vector<3x32x128xi1>, vector<3x32x128xf32>
    %c127_i32_24 = arith.constant 127 : i32
    %87 = tpu.dynamic_rotate %78 by %c127_i32_24 dim 2 : vector<3x32x128xf32>, i32 -> vector<3x32x128xf32>
    %88 = vector.shape_cast %9 : vector<32x128xi1> to vector<1x32x128xi1>
    %89 = vector.broadcast %88 : vector<1x32x128xi1> to vector<3x32x128xi1>
    %90 = arith.select %89, %87, %78 : vector<3x32x128xi1>, vector<3x32x128xf32>
    %c127_i32_25 = arith.constant 127 : i32
    %91 = tpu.dynamic_rotate %90 by %c127_i32_25 dim 2 : vector<3x32x128xf32>, i32 -> vector<3x32x128xf32>
    %92 = vector.shape_cast %9 : vector<32x128xi1> to vector<1x32x128xi1>
    %93 = vector.broadcast %92 : vector<1x32x128xi1> to vector<3x32x128xi1>
    %94 = arith.select %93, %91, %90 : vector<3x32x128xi1>, vector<3x32x128xf32>
    %cst_26 = arith.constant 4.000000e-01 : f32
    %95 = vector.broadcast %cst_26 : f32 to vector<3x32x128xf32>
    %96 = arith.mulf %95, %78 : vector<3x32x128xf32>
    %97 = arith.addf %82, %90 : vector<3x32x128xf32>
    %cst_27 = arith.constant 2.500000e-01 : f32
    %98 = vector.broadcast %cst_27 : f32 to vector<3x32x128xf32>
    %99 = arith.mulf %98, %97 : vector<3x32x128xf32>
    %100 = arith.addf %96, %99 : vector<3x32x128xf32>
    %101 = arith.addf %86, %94 : vector<3x32x128xf32>
    %cst_28 = arith.constant 5.000000e-02 : f32
    %102 = vector.broadcast %cst_28 : f32 to vector<3x32x128xf32>
    %103 = arith.mulf %102, %101 : vector<3x32x128xf32>
    %104 = arith.addf %100, %103 : vector<3x32x128xf32>
    %c1_i32_29 = arith.constant 1 : i32
    %105 = tpu.dynamic_rotate %104 by %c1_i32_29 dim 1 : vector<3x32x128xf32>, i32 -> vector<3x32x128xf32>
    %106 = vector.shape_cast %3 : vector<32x128xi1> to vector<1x32x128xi1>
    %107 = vector.broadcast %106 : vector<1x32x128xi1> to vector<3x32x128xi1>
    %108 = arith.select %107, %105, %104 : vector<3x32x128xi1>, vector<3x32x128xf32>
    %c1_i32_30 = arith.constant 1 : i32
    %109 = tpu.dynamic_rotate %108 by %c1_i32_30 dim 1 : vector<3x32x128xf32>, i32 -> vector<3x32x128xf32>
    %110 = vector.shape_cast %3 : vector<32x128xi1> to vector<1x32x128xi1>
    %111 = vector.broadcast %110 : vector<1x32x128xi1> to vector<3x32x128xi1>
    %112 = arith.select %111, %109, %108 : vector<3x32x128xi1>, vector<3x32x128xf32>
    %c31_i32_31 = arith.constant 31 : i32
    %113 = tpu.dynamic_rotate %104 by %c31_i32_31 dim 1 : vector<3x32x128xf32>, i32 -> vector<3x32x128xf32>
    %114 = vector.shape_cast %5 : vector<32x128xi1> to vector<1x32x128xi1>
    %115 = vector.broadcast %114 : vector<1x32x128xi1> to vector<3x32x128xi1>
    %116 = arith.select %115, %113, %104 : vector<3x32x128xi1>, vector<3x32x128xf32>
    %c31_i32_32 = arith.constant 31 : i32
    %117 = tpu.dynamic_rotate %116 by %c31_i32_32 dim 1 : vector<3x32x128xf32>, i32 -> vector<3x32x128xf32>
    %118 = vector.shape_cast %5 : vector<32x128xi1> to vector<1x32x128xi1>
    %119 = vector.broadcast %118 : vector<1x32x128xi1> to vector<3x32x128xi1>
    %120 = arith.select %119, %117, %116 : vector<3x32x128xi1>, vector<3x32x128xf32>
    %cst_33 = arith.constant 4.000000e-01 : f32
    %121 = vector.broadcast %cst_33 : f32 to vector<3x32x128xf32>
    %122 = arith.mulf %121, %104 : vector<3x32x128xf32>
    %123 = arith.addf %108, %116 : vector<3x32x128xf32>
    %cst_34 = arith.constant 2.500000e-01 : f32
    %124 = vector.broadcast %cst_34 : f32 to vector<3x32x128xf32>
    %125 = arith.mulf %124, %123 : vector<3x32x128xf32>
    %126 = arith.addf %122, %125 : vector<3x32x128xf32>
    %127 = arith.addf %112, %120 : vector<3x32x128xf32>
    %cst_35 = arith.constant 5.000000e-02 : f32
    %128 = vector.broadcast %cst_35 : f32 to vector<3x32x128xf32>
    %129 = arith.mulf %128, %127 : vector<3x32x128xf32>
    %130 = arith.addf %126, %129 : vector<3x32x128xf32>
    %131 = arith.subf %19, %130 : vector<3x32x128xf32>
    %c1_i32_36 = arith.constant 1 : i32
    %132 = tpu.dynamic_rotate %20 by %c1_i32_36 dim 2 : vector<3x32x128xf32>, i32 -> vector<3x32x128xf32>
    %133 = vector.shape_cast %7 : vector<32x128xi1> to vector<1x32x128xi1>
    %134 = vector.broadcast %133 : vector<1x32x128xi1> to vector<3x32x128xi1>
    %135 = arith.select %134, %132, %20 : vector<3x32x128xi1>, vector<3x32x128xf32>
    %c1_i32_37 = arith.constant 1 : i32
    %136 = tpu.dynamic_rotate %135 by %c1_i32_37 dim 2 : vector<3x32x128xf32>, i32 -> vector<3x32x128xf32>
    %137 = vector.shape_cast %7 : vector<32x128xi1> to vector<1x32x128xi1>
    %138 = vector.broadcast %137 : vector<1x32x128xi1> to vector<3x32x128xi1>
    %139 = arith.select %138, %136, %135 : vector<3x32x128xi1>, vector<3x32x128xf32>
    %c127_i32_38 = arith.constant 127 : i32
    %140 = tpu.dynamic_rotate %20 by %c127_i32_38 dim 2 : vector<3x32x128xf32>, i32 -> vector<3x32x128xf32>
    %141 = vector.shape_cast %9 : vector<32x128xi1> to vector<1x32x128xi1>
    %142 = vector.broadcast %141 : vector<1x32x128xi1> to vector<3x32x128xi1>
    %143 = arith.select %142, %140, %20 : vector<3x32x128xi1>, vector<3x32x128xf32>
    %c127_i32_39 = arith.constant 127 : i32
    %144 = tpu.dynamic_rotate %143 by %c127_i32_39 dim 2 : vector<3x32x128xf32>, i32 -> vector<3x32x128xf32>
    %145 = vector.shape_cast %9 : vector<32x128xi1> to vector<1x32x128xi1>
    %146 = vector.broadcast %145 : vector<1x32x128xi1> to vector<3x32x128xi1>
    %147 = arith.select %146, %144, %143 : vector<3x32x128xi1>, vector<3x32x128xf32>
    %cst_40 = arith.constant 4.000000e-01 : f32
    %148 = vector.broadcast %cst_40 : f32 to vector<3x32x128xf32>
    %149 = arith.mulf %148, %20 : vector<3x32x128xf32>
    %150 = arith.addf %135, %143 : vector<3x32x128xf32>
    %cst_41 = arith.constant 2.500000e-01 : f32
    %151 = vector.broadcast %cst_41 : f32 to vector<3x32x128xf32>
    %152 = arith.mulf %151, %150 : vector<3x32x128xf32>
    %153 = arith.addf %149, %152 : vector<3x32x128xf32>
    %154 = arith.addf %139, %147 : vector<3x32x128xf32>
    %cst_42 = arith.constant 5.000000e-02 : f32
    %155 = vector.broadcast %cst_42 : f32 to vector<3x32x128xf32>
    %156 = arith.mulf %155, %154 : vector<3x32x128xf32>
    %157 = arith.addf %153, %156 : vector<3x32x128xf32>
    %c1_i32_43 = arith.constant 1 : i32
    %158 = tpu.dynamic_rotate %157 by %c1_i32_43 dim 1 : vector<3x32x128xf32>, i32 -> vector<3x32x128xf32>
    %159 = vector.shape_cast %3 : vector<32x128xi1> to vector<1x32x128xi1>
    %160 = vector.broadcast %159 : vector<1x32x128xi1> to vector<3x32x128xi1>
    %161 = arith.select %160, %158, %157 : vector<3x32x128xi1>, vector<3x32x128xf32>
    %c1_i32_44 = arith.constant 1 : i32
    %162 = tpu.dynamic_rotate %161 by %c1_i32_44 dim 1 : vector<3x32x128xf32>, i32 -> vector<3x32x128xf32>
    %163 = vector.shape_cast %3 : vector<32x128xi1> to vector<1x32x128xi1>
    %164 = vector.broadcast %163 : vector<1x32x128xi1> to vector<3x32x128xi1>
    %165 = arith.select %164, %162, %161 : vector<3x32x128xi1>, vector<3x32x128xf32>
    %c31_i32_45 = arith.constant 31 : i32
    %166 = tpu.dynamic_rotate %157 by %c31_i32_45 dim 1 : vector<3x32x128xf32>, i32 -> vector<3x32x128xf32>
    %167 = vector.shape_cast %5 : vector<32x128xi1> to vector<1x32x128xi1>
    %168 = vector.broadcast %167 : vector<1x32x128xi1> to vector<3x32x128xi1>
    %169 = arith.select %168, %166, %157 : vector<3x32x128xi1>, vector<3x32x128xf32>
    %c31_i32_46 = arith.constant 31 : i32
    %170 = tpu.dynamic_rotate %169 by %c31_i32_46 dim 1 : vector<3x32x128xf32>, i32 -> vector<3x32x128xf32>
    %171 = vector.shape_cast %5 : vector<32x128xi1> to vector<1x32x128xi1>
    %172 = vector.broadcast %171 : vector<1x32x128xi1> to vector<3x32x128xi1>
    %173 = arith.select %172, %170, %169 : vector<3x32x128xi1>, vector<3x32x128xf32>
    %cst_47 = arith.constant 4.000000e-01 : f32
    %174 = vector.broadcast %cst_47 : f32 to vector<3x32x128xf32>
    %175 = arith.mulf %174, %157 : vector<3x32x128xf32>
    %176 = arith.addf %161, %169 : vector<3x32x128xf32>
    %cst_48 = arith.constant 2.500000e-01 : f32
    %177 = vector.broadcast %cst_48 : f32 to vector<3x32x128xf32>
    %178 = arith.mulf %177, %176 : vector<3x32x128xf32>
    %179 = arith.addf %175, %178 : vector<3x32x128xf32>
    %180 = arith.addf %165, %173 : vector<3x32x128xf32>
    %cst_49 = arith.constant 5.000000e-02 : f32
    %181 = vector.broadcast %cst_49 : f32 to vector<3x32x128xf32>
    %182 = arith.mulf %181, %180 : vector<3x32x128xf32>
    %183 = arith.addf %179, %182 : vector<3x32x128xf32>
    %cst_50 = arith.constant 4.000000e+00 : f32
    %184 = vector.broadcast %cst_50 : f32 to vector<3x32x128xf32>
    %185 = arith.mulf %183, %184 : vector<3x32x128xf32>
    %cst_51 = arith.constant 0.000000e+00 : f32
    %186 = vector.shape_cast %18 : vector<32x128xi1> to vector<1x32x128xi1>
    %187 = vector.broadcast %186 : vector<1x32x128xi1> to vector<3x32x128xi1>
    %188 = vector.broadcast %cst_51 : f32 to vector<3x32x128xf32>
    %189 = arith.select %187, %185, %188 : vector<3x32x128xi1>, vector<3x32x128xf32>
    %c1_i32_52 = arith.constant 1 : i32
    %190 = tpu.dynamic_rotate %189 by %c1_i32_52 dim 2 : vector<3x32x128xf32>, i32 -> vector<3x32x128xf32>
    %191 = vector.shape_cast %7 : vector<32x128xi1> to vector<1x32x128xi1>
    %192 = vector.broadcast %191 : vector<1x32x128xi1> to vector<3x32x128xi1>
    %193 = arith.select %192, %190, %189 : vector<3x32x128xi1>, vector<3x32x128xf32>
    %c1_i32_53 = arith.constant 1 : i32
    %194 = tpu.dynamic_rotate %193 by %c1_i32_53 dim 2 : vector<3x32x128xf32>, i32 -> vector<3x32x128xf32>
    %195 = vector.shape_cast %7 : vector<32x128xi1> to vector<1x32x128xi1>
    %196 = vector.broadcast %195 : vector<1x32x128xi1> to vector<3x32x128xi1>
    %197 = arith.select %196, %194, %193 : vector<3x32x128xi1>, vector<3x32x128xf32>
    %c127_i32_54 = arith.constant 127 : i32
    %198 = tpu.dynamic_rotate %189 by %c127_i32_54 dim 2 : vector<3x32x128xf32>, i32 -> vector<3x32x128xf32>
    %199 = vector.shape_cast %9 : vector<32x128xi1> to vector<1x32x128xi1>
    %200 = vector.broadcast %199 : vector<1x32x128xi1> to vector<3x32x128xi1>
    %201 = arith.select %200, %198, %189 : vector<3x32x128xi1>, vector<3x32x128xf32>
    %c127_i32_55 = arith.constant 127 : i32
    %202 = tpu.dynamic_rotate %201 by %c127_i32_55 dim 2 : vector<3x32x128xf32>, i32 -> vector<3x32x128xf32>
    %203 = vector.shape_cast %9 : vector<32x128xi1> to vector<1x32x128xi1>
    %204 = vector.broadcast %203 : vector<1x32x128xi1> to vector<3x32x128xi1>
    %205 = arith.select %204, %202, %201 : vector<3x32x128xi1>, vector<3x32x128xf32>
    %cst_56 = arith.constant 4.000000e-01 : f32
    %206 = vector.broadcast %cst_56 : f32 to vector<3x32x128xf32>
    %207 = arith.mulf %206, %189 : vector<3x32x128xf32>
    %208 = arith.addf %193, %201 : vector<3x32x128xf32>
    %cst_57 = arith.constant 2.500000e-01 : f32
    %209 = vector.broadcast %cst_57 : f32 to vector<3x32x128xf32>
    %210 = arith.mulf %209, %208 : vector<3x32x128xf32>
    %211 = arith.addf %207, %210 : vector<3x32x128xf32>
    %212 = arith.addf %197, %205 : vector<3x32x128xf32>
    %cst_58 = arith.constant 5.000000e-02 : f32
    %213 = vector.broadcast %cst_58 : f32 to vector<3x32x128xf32>
    %214 = arith.mulf %213, %212 : vector<3x32x128xf32>
    %215 = arith.addf %211, %214 : vector<3x32x128xf32>
    %c1_i32_59 = arith.constant 1 : i32
    %216 = tpu.dynamic_rotate %215 by %c1_i32_59 dim 1 : vector<3x32x128xf32>, i32 -> vector<3x32x128xf32>
    %217 = vector.shape_cast %3 : vector<32x128xi1> to vector<1x32x128xi1>
    %218 = vector.broadcast %217 : vector<1x32x128xi1> to vector<3x32x128xi1>
    %219 = arith.select %218, %216, %215 : vector<3x32x128xi1>, vector<3x32x128xf32>
    %c1_i32_60 = arith.constant 1 : i32
    %220 = tpu.dynamic_rotate %219 by %c1_i32_60 dim 1 : vector<3x32x128xf32>, i32 -> vector<3x32x128xf32>
    %221 = vector.shape_cast %3 : vector<32x128xi1> to vector<1x32x128xi1>
    %222 = vector.broadcast %221 : vector<1x32x128xi1> to vector<3x32x128xi1>
    %223 = arith.select %222, %220, %219 : vector<3x32x128xi1>, vector<3x32x128xf32>
    %c31_i32_61 = arith.constant 31 : i32
    %224 = tpu.dynamic_rotate %215 by %c31_i32_61 dim 1 : vector<3x32x128xf32>, i32 -> vector<3x32x128xf32>
    %225 = vector.shape_cast %5 : vector<32x128xi1> to vector<1x32x128xi1>
    %226 = vector.broadcast %225 : vector<1x32x128xi1> to vector<3x32x128xi1>
    %227 = arith.select %226, %224, %215 : vector<3x32x128xi1>, vector<3x32x128xf32>
    %c31_i32_62 = arith.constant 31 : i32
    %228 = tpu.dynamic_rotate %227 by %c31_i32_62 dim 1 : vector<3x32x128xf32>, i32 -> vector<3x32x128xf32>
    %229 = vector.shape_cast %5 : vector<32x128xi1> to vector<1x32x128xi1>
    %230 = vector.broadcast %229 : vector<1x32x128xi1> to vector<3x32x128xi1>
    %231 = arith.select %230, %228, %227 : vector<3x32x128xi1>, vector<3x32x128xf32>
    %cst_63 = arith.constant 4.000000e-01 : f32
    %232 = vector.broadcast %cst_63 : f32 to vector<3x32x128xf32>
    %233 = arith.mulf %232, %215 : vector<3x32x128xf32>
    %234 = arith.addf %219, %227 : vector<3x32x128xf32>
    %cst_64 = arith.constant 2.500000e-01 : f32
    %235 = vector.broadcast %cst_64 : f32 to vector<3x32x128xf32>
    %236 = arith.mulf %235, %234 : vector<3x32x128xf32>
    %237 = arith.addf %233, %236 : vector<3x32x128xf32>
    %238 = arith.addf %223, %231 : vector<3x32x128xf32>
    %cst_65 = arith.constant 5.000000e-02 : f32
    %239 = vector.broadcast %cst_65 : f32 to vector<3x32x128xf32>
    %240 = arith.mulf %239, %238 : vector<3x32x128xf32>
    %241 = arith.addf %237, %240 : vector<3x32x128xf32>
    %242 = arith.subf %20, %241 : vector<3x32x128xf32>
    %243 = arith.subf %131, %242 : vector<3x32x128xf32>
    %244 = math.absf %243 : vector<3x32x128xf32>
    %cst_66 = arith.constant dense<0.000000e+00> : vector<32x128xf32>
    %245 = vector.multi_reduction <add>, %244, %cst_66 [0] : vector<3x32x128xf32> to vector<32x128xf32>
    %246 = vector.shape_cast %245 : vector<32x128xf32> to vector<1x32x128xf32>
    %cst_67 = arith.constant dense<0.000000e+00> : vector<1x128xf32>
    %247 = vector.multi_reduction <add>, %246, %cst_67 [1] : vector<1x32x128xf32> to vector<1x128xf32>
    %248 = vector.shape_cast %247 : vector<1x128xf32> to vector<1x1x128xf32>
    %c0_68 = arith.constant 0 : index
    %c0_69 = arith.constant 0 : index
    %c0_70 = arith.constant 0 : index
    %249 = vector.load %arg3[%c0_68, %c0_69, %c0_70] : memref<1x1x128xf32, #tpu.memory_space<vmem>>, vector<1x1x128xf32>
    tpu.vector_store %arg3[%c0_68, %c0_69, %c0_70], %248 {strides = array<i32>} : memref<1x1x128xf32, #tpu.memory_space<vmem>>, vector<1x1x128xf32>,
    return
  }
  func.func @transform_0(%arg0: i32) -> (i32, i32, i32) {
    %c0_i32 = arith.constant 0 : i32
    %c0_i32_0 = arith.constant 0 : i32
    %c0_i32_1 = arith.constant 0 : i32
    return %arg0, %c0_i32, %c0_i32_0 : i32, i32, i32
  }
  func.func @transform_1(%arg0: i32) -> (i32, i32, i32) {
    %c0_i32 = arith.constant 0 : i32
    %c0_i32_0 = arith.constant 0 : i32
    %c0_i32_1 = arith.constant 0 : i32
    return %arg0, %c0_i32, %c0_i32_0 : i32, i32, i32
  }
  func.func @transform_2(%arg0: i32) -> (i32, i32, i32) {
    %c0_i32 = arith.constant 0 : i32
    %c0_i32_0 = arith.constant 0 : i32
    %c0_i32_1 = arith.constant 0 : i32
    return %arg0, %c0_i32, %c0_i32_0 : i32, i32, i32
  }
}

</mosaic_0001>

<llo_original>
// kernel: tpu_custom_call.1
$region0: #{tpu_custom_call.1}
  #allocation0 [shape = 'u32[]', space=smem, size = 0x4, offset = 0x4, fixed_abs, tag = 'smem constant byte address 0x4 - core index']
  #allocation1 [shape = 'u32[144,128]{1,0:T(1,128)}', space=vmem, size = 0x12000, scoped, tag = 'internal scratch']
  %s0 = inlined_call_operand.hbm [shape: f32[6,32,128], index: 0, kind: input, shape index: {}]
  %s1 = inlined_call_operand.hbm [shape: f32[6,32,128], index: 1, kind: input, shape index: {}]
  %s2 = inlined_call_operand.hbm [shape: f32[2,1,128], index: 2, kind: output, shape index: {}]
  %s3 = sld [smem:[#allocation0]]
  $region49: #{tpu_custom_call.1} parent=0
    _
  %s5 = ssub.s32 1, %s3
  %s6 = scalar_select 0, %s5, %s3
  $region1: #{tpu_custom_call.1} parent=0
    #allocation2 [shape = 'u8[98304]{0}', space=vmem, size = 0x18000, scoped, tag = 'input window, operand 0']
    #allocation3 [shape = 's32[2]{0}', space=sflag, size = 0x8, scoped, tag = 'scoped memory for tpu_custom_call.1']
    #allocation4 [shape = 's32[2]{0}', space=sflag, size = 0x8, scoped, tag = 'scoped memory for tpu_custom_call.1']
    #allocation5 [shape = 'u8[98304]{0}', space=vmem, size = 0x18000, scoped, tag = 'input window, operand 1']
    #allocation6 [shape = 's32[2]{0}', space=sflag, size = 0x8, scoped, tag = 'scoped memory for tpu_custom_call.1']
    #allocation7 [shape = 'u8[1024]{0}', space=vmem, size = 0x400, scoped, tag = 'output window, operand 0']
    %7 = vsyncpa [#allocation3], 0
    %s8 = scalar_lea.sflag [#allocation3], 1
    %9 = vsyncpa %s8, 0
    %10 = vsyncpa [#allocation6], 0
    %s11 = scalar_lea.sflag [#allocation6], 1
    %12 = vsyncpa %s11, 0
    %13 = vsyncpa [#allocation4], 0
    %s14 = scalar_lea.sflag [#allocation4], 1
    %15 = vsyncpa %s14, 0
    loop: start=0, step=1, limit=4
    $region2: #{tpu_custom_call.1} parent=1 // loop_pre_header
      _
    $region3: #{tpu_custom_call.1} parent=1 // loop_header
      %s17 = sphi 0, %s21
      %p18 = scmp.ge.s32.totalorder %s17, 4
      %s27 = sphi 0, %s29
      %s30 = sphi 0, %s27
      %s31 = sphi 0, %s30
      %s47 = sphi 0, %s31
      %s53 = sphi 0, %s55
      %s56 = sphi 0, %s53
      %s57 = sphi 0, %s56
      %s73 = sphi 0, %s57
      %s79 = sphi 0, %s81
      %s82 = sphi 0, %s79
      %s83 = sphi 0, %s82
      %s99 = sphi 0, %s83
    $region4: #{tpu_custom_call.1} parent=1 // loop_header_branch
      %20 = sbr.rel (%p18) target = $region8
    $region5: #{tpu_custom_call.1} parent=1 // loop_body
      %s22 = ssub.s32 %s17, 1
      %s23 = ssub.s32 %s17, 2
      %s24 = sadd.s32 %s17, 1
      %s25 = ssub.s32 %s17, %s24
      %p26 = scmp.eq.s32.totalorder %s25, 0
      %s28 = sadd.s32 %s27, 1
      %s29 = scalar_select %p26, %s27, %s28
      %p32 = pneg %p26
      %p33 = scmp.eq.s32.totalorder %s17, 1
      %p34 = por %p32, %p33
      %p35 = scmp.ne.s32.totalorder %s27, %s30
      %p36 = scmp.eq.s32.totalorder %s17, 0
      %p37 = por %p35, %p36
      %p38 = scmp.ne.s32.totalorder %s27, %s30
      %p39 = scmp.eq.s32.totalorder %s22, 1
      %p40 = por %p38, %p39
      %p41 = scmp.ne.s32.totalorder %s30, %s31
      %p42 = scmp.eq.s32.totalorder %s22, 0
      %p43 = por %p41, %p42
      %p44 = scmp.ne.s32.totalorder %s30, %s31
      %p45 = scmp.eq.s32.totalorder %s23, 1
      %p46 = por %p44, %p45
      %p48 = scmp.ne.s32.totalorder %s31, %s47
      %p49 = scmp.eq.s32.totalorder %s23, 0
      %p50 = por %p48, %p49
      %s51 = ssub.s32 %s17, %s24
      %p52 = scmp.eq.s32.totalorder %s51, 0
      %s54 = sadd.s32 %s53, 1
      %s55 = scalar_select %p52, %s53, %s54
      %p58 = pneg %p52
      %p59 = scmp.eq.s32.totalorder %s17, 1
      %p60 = por %p58, %p59
      %p61 = scmp.ne.s32.totalorder %s53, %s56
      %p62 = scmp.eq.s32.totalorder %s17, 0
      %p63 = por %p61, %p62
      %p64 = scmp.ne.s32.totalorder %s53, %s56
      %p65 = scmp.eq.s32.totalorder %s22, 1
      %p66 = por %p64, %p65
      %p67 = scmp.ne.s32.totalorder %s56, %s57
      %p68 = scmp.eq.s32.totalorder %s22, 0
      %p69 = por %p67, %p68
      %p70 = scmp.ne.s32.totalorder %s56, %s57
      %p71 = scmp.eq.s32.totalorder %s23, 1
      %p72 = por %p70, %p71
      %p74 = scmp.ne.s32.totalorder %s57, %s73
      %p75 = scmp.eq.s32.totalorder %s23, 0
      %p76 = por %p74, %p75
      %s77 = ssub.s32 %s17, %s24
      %p78 = scmp.eq.s32.totalorder %s77, 0
      %s80 = sadd.s32 %s79, 1
      %s81 = scalar_select %p78, %s79, %s80
      %p84 = pneg %p78
      %p85 = scmp.eq.s32.totalorder %s17, 1
      %p86 = por %p84, %p85
      %p87 = scmp.ne.s32.totalorder %s79, %s82
      %p88 = scmp.eq.s32.totalorder %s17, 0
      %p89 = por %p87, %p88
      %p90 = scmp.ne.s32.totalorder %s79, %s82
      %p91 = scmp.eq.s32.totalorder %s22, 1
      %p92 = por %p90, %p91
      %p93 = scmp.ne.s32.totalorder %s82, %s83
      %p94 = scmp.eq.s32.totalorder %s22, 0
      %p95 = por %p93, %p94
      %p96 = scmp.ne.s32.totalorder %s82, %s83
      %p97 = scmp.eq.s32.totalorder %s23, 1
      %p98 = por %p96, %p97
      %p100 = scmp.ne.s32.totalorder %s83, %s99
      %p101 = scmp.eq.s32.totalorder %s23, 0
      %p102 = por %p100, %p101
      %p103 = scmp.le.s32.totalorder 1, %s17
      %p104 = scmp.lt.s32.totalorder %s17, 3
      %p105 = pnand %p103, %p104
      %p106 = pneg %p105
      // Predicated region
      $region9: #{tpu_custom_call.1} parent=5 // pred_check
        _
      $region10: #{tpu_custom_call.1} parent=5 // pred_check_branch
        %108 = sbr.rel (%p105) target = $region12
      $region11: #{tpu_custom_call.1} parent=5 // pred_region
        %s109 = ssub.s32 %s17, 1
      $region12: #{tpu_custom_call.1} parent=5 // pred_fallthru
        _
      %p110 = scmp.lt.s32.totalorder %s17, 2
      // Predicated region
      $region13: #{tpu_custom_call.1} parent=5 // pred_check
        %p111 = pneg %p110
      $region14: #{tpu_custom_call.1} parent=5 // pred_check_branch
        %113 = sbr.rel (%p111) target = $region16
      $region15: #{tpu_custom_call.1} parent=5 // pred_region
        // Predicated region
        $region17: #{tpu_custom_call.1} parent=15 // pred_check
          %p114 = pneg %p37
        $region18: #{tpu_custom_call.1} parent=15 // pred_check_branch
          %116 = sbr.rel (%p114) target = $region20
        $region19: #{tpu_custom_call.1} parent=15 // pred_region
          %s117 = sand.u32 %s27, 1
          %s118 = scalar_lea.sflag [#allocation3], %s117
          %s119 = sand.u32 %s27, 1
          %s120 = smul.addr %s119, 96
          %s121 = scalar_lea.vmem [#allocation2], %s120
          %s122 = smul.u32 3, %s17
          %s124 = ssub.s32 1536, 1536
          %125 = vsyncadd %s118, %s124
          %s126 = smul.addr %s122, 4
          %s127 = smul.addr %s126, 128
          %s128 = scalar_lea.hbm %s0, %s127
          %s129 = sshll.u32 %s121, 4
          %s130 = int_to_ptr.vmem [resolvable:$true] %s129
          %135 = dma.hbm_to_vmem [thread:$0]  %s128, 1536, %s130, %s118, 128, 128, 8
        $region20: #{tpu_custom_call.1} parent=15 // pred_fallthru
          _
        // Predicated region
        $region21: #{tpu_custom_call.1} parent=15 // pred_check
          %p136 = pneg %p63
        $region22: #{tpu_custom_call.1} parent=15 // pred_check_branch
          %138 = sbr.rel (%p136) target = $region24
        $region23: #{tpu_custom_call.1} parent=15 // pred_region
          %s139 = sand.u32 %s53, 1
          %s140 = scalar_lea.sflag [#allocation6], %s139
          %s141 = sand.u32 %s53, 1
          %s142 = smul.addr %s141, 96
          %s143 = scalar_lea.vmem [#allocation5], %s142
          %s144 = smul.u32 3, %s17
          %s146 = ssub.s32 1536, 1536
          %147 = vsyncadd %s140, %s146
          %s148 = smul.addr %s144, 4
          %s149 = smul.addr %s148, 128
          %s150 = scalar_lea.hbm %s1, %s149
          %s151 = sshll.u32 %s143, 4
          %s152 = int_to_ptr.vmem [resolvable:$true] %s151
          %157 = dma.hbm_to_vmem [thread:$0]  %s150, 1536, %s152, %s140, 128, 128, 8
        $region24: #{tpu_custom_call.1} parent=15 // pred_fallthru
          _
      $region16: #{tpu_custom_call.1} parent=5 // pred_fallthru
        _
      %p158 = scmp.le.s32.totalorder 1, %s17
      %p159 = scmp.lt.s32.totalorder %s17, 3
      %p160 = pnand %p158, %p159
      %p161 = pneg %p160
      // Predicated region
      $region25: #{tpu_custom_call.1} parent=5 // pred_check
        _
      $region26: #{tpu_custom_call.1} parent=5 // pred_check_branch
        %163 = sbr.rel (%p160) target = $region28
      $region27: #{tpu_custom_call.1} parent=5 // pred_region
        %s164 = ssub.s32 %s17, 1
        %s165 = sand.u32 %s30, 1
        %s166 = scalar_lea.sflag [#allocation3], %s165
        %s167 = sand.u32 %s30, 1
        %s168 = smul.addr %s167, 96
        %s169 = scalar_lea.vmem [#allocation2], %s168
        // Predicated region
        $region29: #{tpu_custom_call.1} parent=27 // pred_check
          %p170 = pneg %p43
        $region30: #{tpu_custom_call.1} parent=27 // pred_check_branch
          %172 = sbr.rel (%p170) target = $region32
        $region31: #{tpu_custom_call.1} parent=27 // pred_region
          %173 = dma.done %s166, 1536
        $region32: #{tpu_custom_call.1} parent=27 // pred_fallthru
          _
        %s174 = sand.u32 %s56, 1
        %s175 = scalar_lea.sflag [#allocation6], %s174
        %s176 = sand.u32 %s56, 1
        %s177 = smul.addr %s176, 96
        %s178 = scalar_lea.vmem [#allocation5], %s177
        // Predicated region
        $region33: #{tpu_custom_call.1} parent=27 // pred_check
          %p179 = pneg %p69
        $region34: #{tpu_custom_call.1} parent=27 // pred_check_branch
          %181 = sbr.rel (%p179) target = $region36
        $region35: #{tpu_custom_call.1} parent=27 // pred_region
          %182 = dma.done %s175, 1536
        $region36: #{tpu_custom_call.1} parent=27 // pred_fallthru
          _
        %s183 = sand.u32 %s30, 1
        %s184 = scalar_lea.sflag [#allocation3], %s183
        %s185 = sand.u32 %s30, 1
        %s186 = smul.addr %s185, 96
        %s187 = scalar_lea.vmem [#allocation2], %s186
        %p188 = pneg %p43
        %p189 = pneg %p40
        %s190 = sand.u32 %s56, 1
        %s191 = scalar_lea.sflag [#allocation6], %s190
        %s192 = sand.u32 %s56, 1
        %s193 = smul.addr %s192, 96
        %s194 = scalar_lea.vmem [#allocation5], %s193
        %p195 = pneg %p69
        %p196 = pneg %p66
        %p197 = pneg %p95
        %p198 = pneg %p92
        %s199 = sand.u32 %s82, 1
        %s200 = scalar_lea.sflag [#allocation4], %s199
        %s201 = sand.u32 %s82, 1
        %s202 = scalar_lea.vmem [#allocation7], %s201
        %s203 = smul.u32 3, %s22
        %s204 = smul.u32 3, %s22
        %v205 = vlaneseq
        %v206 = vshrl.u32 %v205, 7
        %v207 = vadd.s32 %v206, 8
        %v208 = vadd.s32 %v206, 16
        %v209 = vadd.s32 %v206, 24
        %v210 = vlaneseq
        %v211 = vand.u32 %v210, 127
        %vm212 = vcmp.ge.s32.totalorder %v206, 1
        %vm213 = vcmp.ge.s32.totalorder %v207, 1
        %vm214 = vcmp.ge.s32.totalorder %v208, 1
        %vm215 = vcmp.ge.s32.totalorder %v209, 1
        %vm216 = vcmp.le.s32.totalorder %v206, 30
        %vm217 = vcmp.le.s32.totalorder %v207, 30
        %vm218 = vcmp.le.s32.totalorder %v208, 30
        %vm219 = vcmp.le.s32.totalorder %v209, 30
        %vm220 = vcmp.ge.s32.totalorder %v211, 1
        %vm221 = vcmp.le.s32.totalorder %v211, 126
        %v222 = vand.u32 %v206, 1
        %v223 = vand.u32 %v207, 1
        %v224 = vand.u32 %v208, 1
        %v225 = vand.u32 %v209, 1
        %vm226 = vcmp.eq.s32.totalorder %v222, 0
        %vm227 = vcmp.eq.s32.totalorder %v223, 0
        %vm228 = vcmp.eq.s32.totalorder %v224, 0
        %vm229 = vcmp.eq.s32.totalorder %v225, 0
        %v230 = vand.u32 %v211, 1
        %vm231 = vcmp.eq.s32.totalorder %v230, 0
        %vm232 = vmand %vm226, %vm231
        %vm233 = vmand %vm227, %vm231
        %vm234 = vmand %vm228, %vm231
        %vm235 = vmand %vm229, %vm231
        %v236 = vld [vmem:[%s169] sm:$0xff]
        %v237 = vld [vmem:[%s169 + $0x8] sm:$0xff]
        %v238 = vld [vmem:[%s169 + $0x10] sm:$0xff]
        %v239 = vld [vmem:[%s169 + $0x18] sm:$0xff]
        %v240 = vld [vmem:[%s169 + $0x20] sm:$0xff]
        %v241 = vld [vmem:[%s169 + $0x28] sm:$0xff]
        %v242 = vld [vmem:[%s169 + $0x30] sm:$0xff]
        %v243 = vld [vmem:[%s169 + $0x38] sm:$0xff]
        %v244 = vld [vmem:[%s169 + $0x40] sm:$0xff]
        %v245 = vld [vmem:[%s169 + $0x48] sm:$0xff]
        %v246 = vld [vmem:[%s169 + $0x50] sm:$0xff]
        %v247 = vld [vmem:[%s169 + $0x58] sm:$0xff]
        %v248 = vld [vmem:[%s178] sm:$0xff]
        %v249 = vld [vmem:[%s178 + $0x8] sm:$0xff]
        %v250 = vld [vmem:[%s178 + $0x10] sm:$0xff]
        %v251 = vld [vmem:[%s178 + $0x18] sm:$0xff]
        %v252 = vld [vmem:[%s178 + $0x20] sm:$0xff]
        %v253 = vld [vmem:[%s178 + $0x28] sm:$0xff]
        %v254 = vld [vmem:[%s178 + $0x30] sm:$0xff]
        %v255 = vld [vmem:[%s178 + $0x38] sm:$0xff]
        %v256 = vld [vmem:[%s178 + $0x40] sm:$0xff]
        %v257 = vld [vmem:[%s178 + $0x48] sm:$0xff]
        %v258 = vld [vmem:[%s178 + $0x50] sm:$0xff]
        %v259 = vld [vmem:[%s178 + $0x58] sm:$0xff]
        %260 = vrot.lane.b32.xlu0 %v236, 1
        %v261 = vpop.permute.xlu0 %260
        %262 = vrot.lane.b32.xlu0 %v237, 1
        %v263 = vpop.permute.xlu0 %262
        %264 = vrot.lane.b32.xlu0 %v238, 1
        %v265 = vpop.permute.xlu0 %264
        %266 = vrot.lane.b32.xlu0 %v239, 1
        %v267 = vpop.permute.xlu0 %266
        %268 = vrot.lane.b32.xlu0 %v240, 1
        %v269 = vpop.permute.xlu0 %268
        %270 = vrot.lane.b32.xlu0 %v241, 1
        %v271 = vpop.permute.xlu0 %270
        %272 = vrot.lane.b32.xlu0 %v242, 1
        %v273 = vpop.permute.xlu0 %272
        %274 = vrot.lane.b32.xlu0 %v243, 1
        %v275 = vpop.permute.xlu0 %274
        %276 = vrot.lane.b32.xlu0 %v244, 1
        %v277 = vpop.permute.xlu0 %276
        %278 = vrot.lane.b32.xlu0 %v245, 1
        %v279 = vpop.permute.xlu0 %278
        %280 = vrot.lane.b32.xlu0 %v246, 1
        %v281 = vpop.permute.xlu0 %280
        %282 = vrot.lane.b32.xlu0 %v247, 1
        %v283 = vpop.permute.xlu0 %282
        %v284 = vsel %vm220, 1, 0
        %vm285 = vcmp.eq.s32.totalorder %v284, 1
        %v286 = vsel %vm285, %v261, %v236
        %v287 = vsel %vm285, %v263, %v237
        %v288 = vsel %vm285, %v265, %v238
        %v289 = vsel %vm285, %v267, %v239
        %v290 = vsel %vm285, %v269, %v240
        %v291 = vsel %vm285, %v271, %v241
        %v292 = vsel %vm285, %v273, %v242
        %v293 = vsel %vm285, %v275, %v243
        %v294 = vsel %vm285, %v277, %v244
        %v295 = vsel %vm285, %v279, %v245
        %v296 = vsel %vm285, %v281, %v246
        %v297 = vsel %vm285, %v283, %v247
        %298 = vrot.lane.b32.xlu0 %v286, 1
        %v299 = vpop.permute.xlu0 %298
        %300 = vrot.lane.b32.xlu0 %v287, 1
        %v301 = vpop.permute.xlu0 %300
        %302 = vrot.lane.b32.xlu0 %v288, 1
        %v303 = vpop.permute.xlu0 %302
        %304 = vrot.lane.b32.xlu0 %v289, 1
        %v305 = vpop.permute.xlu0 %304
        %306 = vrot.lane.b32.xlu0 %v290, 1
        %v307 = vpop.permute.xlu0 %306
        %308 = vrot.lane.b32.xlu0 %v291, 1
        %v309 = vpop.permute.xlu0 %308
        %310 = vrot.lane.b32.xlu0 %v292, 1
        %v311 = vpop.permute.xlu0 %310
        %312 = vrot.lane.b32.xlu0 %v293, 1
        %v313 = vpop.permute.xlu0 %312
        %314 = vrot.lane.b32.xlu0 %v294, 1
        %v315 = vpop.permute.xlu0 %314
        %316 = vrot.lane.b32.xlu0 %v295, 1
        %v317 = vpop.permute.xlu0 %316
        %318 = vrot.lane.b32.xlu0 %v296, 1
        %v319 = vpop.permute.xlu0 %318
        %320 = vrot.lane.b32.xlu0 %v297, 1
        %v321 = vpop.permute.xlu0 %320
        %v322 = vsel %vm285, %v299, %v236
        %v323 = vsel %vm285, %v301, %v237
        %v324 = vsel %vm285, %v303, %v238
        %v325 = vsel %vm285, %v305, %v239
        %v326 = vsel %vm285, %v307, %v240
        %v327 = vsel %vm285, %v309, %v241
        %v328 = vsel %vm285, %v311, %v242
        %v329 = vsel %vm285, %v313, %v243
        %v330 = vsel %vm285, %v315, %v244
        %v331 = vsel %vm285, %v317, %v245
        %v332 = vsel %vm285, %v319, %v246
        %v333 = vsel %vm285, %v321, %v247
        %334 = vrot.lane.b32.xlu0 %v236, 127
        %v335 = vpop.permute.xlu0 %334
        %336 = vrot.lane.b32.xlu0 %v237, 127
        %v337 = vpop.permute.xlu0 %336
        %338 = vrot.lane.b32.xlu0 %v238, 127
        %v339 = vpop.permute.xlu0 %338
        %340 = vrot.lane.b32.xlu0 %v239, 127
        %v341 = vpop.permute.xlu0 %340
        %342 = vrot.lane.b32.xlu0 %v240, 127
        %v343 = vpop.permute.xlu0 %342
        %344 = vrot.lane.b32.xlu0 %v241, 127
        %v345 = vpop.permute.xlu0 %344
        %346 = vrot.lane.b32.xlu0 %v242, 127
        %v347 = vpop.permute.xlu0 %346
        %348 = vrot.lane.b32.xlu0 %v243, 127
        %v349 = vpop.permute.xlu0 %348
        %350 = vrot.lane.b32.xlu0 %v244, 127
        %v351 = vpop.permute.xlu0 %350
        %352 = vrot.lane.b32.xlu0 %v245, 127
        %v353 = vpop.permute.xlu0 %352
        %354 = vrot.lane.b32.xlu0 %v246, 127
        %v355 = vpop.permute.xlu0 %354
        %356 = vrot.lane.b32.xlu0 %v247, 127
        %v357 = vpop.permute.xlu0 %356
        %v358 = vsel %vm221, 1, 0
        %vm359 = vcmp.eq.s32.totalorder %v358, 1
        %v360 = vsel %vm359, %v335, %v236
        %v361 = vsel %vm359, %v337, %v237
        %v362 = vsel %vm359, %v339, %v238
        %v363 = vsel %vm359, %v341, %v239
        %v364 = vsel %vm359, %v343, %v240
        %v365 = vsel %vm359, %v345, %v241
        %v366 = vsel %vm359, %v347, %v242
        %v367 = vsel %vm359, %v349, %v243
        %v368 = vsel %vm359, %v351, %v244
        %v369 = vsel %vm359, %v353, %v245
        %v370 = vsel %vm359, %v355, %v246
        %v371 = vsel %vm359, %v357, %v247
        %372 = vrot.lane.b32.xlu0 %v360, 127
        %v373 = vpop.permute.xlu0 %372
        %374 = vrot.lane.b32.xlu0 %v361, 127
        %v375 = vpop.permute.xlu0 %374
        %376 = vrot.lane.b32.xlu0 %v362, 127
        %v377 = vpop.permute.xlu0 %376
        %378 = vrot.lane.b32.xlu0 %v363, 127
        %v379 = vpop.permute.xlu0 %378
        %380 = vrot.lane.b32.xlu0 %v364, 127
        %v381 = vpop.permute.xlu0 %380
        %382 = vrot.lane.b32.xlu0 %v365, 127
        %v383 = vpop.permute.xlu0 %382
        %384 = vrot.lane.b32.xlu0 %v366, 127
        %v385 = vpop.permute.xlu0 %384
        %386 = vrot.lane.b32.xlu0 %v367, 127
        %v387 = vpop.permute.xlu0 %386
        %388 = vrot.lane.b32.xlu0 %v368, 127
        %v389 = vpop.permute.xlu0 %388
        %390 = vrot.lane.b32.xlu0 %v369, 127
        %v391 = vpop.permute.xlu0 %390
        %392 = vrot.lane.b32.xlu0 %v370, 127
        %v393 = vpop.permute.xlu0 %392
        %394 = vrot.lane.b32.xlu0 %v371, 127
        %v395 = vpop.permute.xlu0 %394
        %v396 = vsel %vm359, %v373, %v236
        %v397 = vsel %vm359, %v375, %v237
        %v398 = vsel %vm359, %v377, %v238
        %v399 = vsel %vm359, %v379, %v239
        %v400 = vsel %vm359, %v381, %v240
        %v401 = vsel %vm359, %v383, %v241
        %v402 = vsel %vm359, %v385, %v242
        %v403 = vsel %vm359, %v387, %v243
        %v404 = vsel %vm359, %v389, %v244
        %v405 = vsel %vm359, %v391, %v245
        %v406 = vsel %vm359, %v393, %v246
        %v407 = vsel %vm359, %v395, %v247
        %v408 = vmul.f32 %v236, 0.4
        %v409 = vmul.f32 %v237, 0.4
        %v410 = vmul.f32 %v238, 0.4
        %v411 = vmul.f32 %v239, 0.4
        %v412 = vmul.f32 %v240, 0.4
        %v413 = vmul.f32 %v241, 0.4
        %v414 = vmul.f32 %v242, 0.4
        %v415 = vmul.f32 %v243, 0.4
        %v416 = vmul.f32 %v244, 0.4
        %v417 = vmul.f32 %v245, 0.4
        %v418 = vmul.f32 %v246, 0.4
        %v419 = vmul.f32 %v247, 0.4
        %v420 = vadd.f32 %v286, %v360
        %v421 = vadd.f32 %v287, %v361
        %v422 = vadd.f32 %v288, %v362
        %v423 = vadd.f32 %v289, %v363
        %v424 = vadd.f32 %v290, %v364
        %v425 = vadd.f32 %v291, %v365
        %v426 = vadd.f32 %v292, %v366
        %v427 = vadd.f32 %v293, %v367
        %v428 = vadd.f32 %v294, %v368
        %v429 = vadd.f32 %v295, %v369
        %v430 = vadd.f32 %v296, %v370
        %v431 = vadd.f32 %v297, %v371
        %v432 = vmul.f32 %v420, 0.25
        %v433 = vmul.f32 %v421, 0.25
        %v434 = vmul.f32 %v422, 0.25
        %v435 = vmul.f32 %v423, 0.25
        %v436 = vmul.f32 %v424, 0.25
        %v437 = vmul.f32 %v425, 0.25
        %v438 = vmul.f32 %v426, 0.25
        %v439 = vmul.f32 %v427, 0.25
        %v440 = vmul.f32 %v428, 0.25
        %v441 = vmul.f32 %v429, 0.25
        %v442 = vmul.f32 %v430, 0.25
        %v443 = vmul.f32 %v431, 0.25
        %v444 = vadd.f32 %v408, %v432
        %v445 = vadd.f32 %v409, %v433
        %v446 = vadd.f32 %v410, %v434
        %v447 = vadd.f32 %v411, %v435
        %v448 = vadd.f32 %v412, %v436
        %v449 = vadd.f32 %v413, %v437
        %v450 = vadd.f32 %v414, %v438
        %v451 = vadd.f32 %v415, %v439
        %v452 = vadd.f32 %v416, %v440
        %v453 = vadd.f32 %v417, %v441
        %v454 = vadd.f32 %v418, %v442
        %v455 = vadd.f32 %v419, %v443
        %v456 = vadd.f32 %v322, %v396
        %v457 = vadd.f32 %v323, %v397
        %v458 = vadd.f32 %v324, %v398
        %v459 = vadd.f32 %v325, %v399
        %v460 = vadd.f32 %v326, %v400
        %v461 = vadd.f32 %v327, %v401
        %v462 = vadd.f32 %v328, %v402
        %v463 = vadd.f32 %v329, %v403
        %v464 = vadd.f32 %v330, %v404
        %v465 = vadd.f32 %v331, %v405
        %v466 = vadd.f32 %v332, %v406
        %v467 = vadd.f32 %v333, %v407
        %v468 = vmul.f32 %v456, 0.05
        %v469 = vmul.f32 %v457, 0.05
        %v470 = vmul.f32 %v458, 0.05
        %v471 = vmul.f32 %v459, 0.05
        %v472 = vmul.f32 %v460, 0.05
        %v473 = vmul.f32 %v461, 0.05
        %v474 = vmul.f32 %v462, 0.05
        %v475 = vmul.f32 %v463, 0.05
        %v476 = vmul.f32 %v464, 0.05
        %v477 = vmul.f32 %v465, 0.05
        %v478 = vmul.f32 %v466, 0.05
        %v479 = vmul.f32 %v467, 0.05
        %v480 = vadd.f32 %v444, %v468
        %v481 = vadd.f32 %v445, %v469
        %v482 = vadd.f32 %v446, %v470
        %v483 = vadd.f32 %v447, %v471
        %v484 = vadd.f32 %v448, %v472
        %v485 = vadd.f32 %v449, %v473
        %v486 = vadd.f32 %v450, %v474
        %v487 = vadd.f32 %v451, %v475
        %v488 = vadd.f32 %v452, %v476
        %v489 = vadd.f32 %v453, %v477
        %v490 = vadd.f32 %v454, %v478
        %v491 = vadd.f32 %v455, %v479
        %v492 = vrot.slane %v480, 7
        %v493 = vrot.slane %v484, 7
        %v494 = vrot.slane %v488, 7
        %v495 = vrot.slane %v481, 7
        %v496 = vrot.slane %v485, 7
        %v497 = vrot.slane %v489, 7
        %v498 = vrot.slane %v482, 7
        %v499 = vrot.slane %v486, 7
        %v500 = vrot.slane %v490, 7
        %v501 = vrot.slane %v483, 7
        %v502 = vrot.slane %v487, 7
        %v503 = vrot.slane %v491, 7
        %vm504 = vcmp.lt.s32.totalorder %v206, 1
        %v505 = vsel %vm504, %v498, %v501
        %v506 = vsel %vm504, %v499, %v502
        %v507 = vsel %vm504, %v500, %v503
        %v508 = vsel %vm504, %v495, %v498
        %v509 = vsel %vm504, %v496, %v499
        %v510 = vsel %vm504, %v497, %v500
        %v511 = vsel %vm504, %v492, %v495
        %v512 = vsel %vm504, %v493, %v496
        %v513 = vsel %vm504, %v494, %v497
        %v514 = vsel %vm504, %v501, %v492
        %v515 = vsel %vm504, %v502, %v493
        %v516 = vsel %vm504, %v503, %v494
        %v517 = vsel %vm212, 1, 0
        %v518 = vsel %vm213, 1, 0
        %v519 = vsel %vm214, 1, 0
        %v520 = vsel %vm215, 1, 0
        %vm521 = vcmp.eq.s32.totalorder %v517, 1
        %vm522 = vcmp.eq.s32.totalorder %v518, 1
        %vm523 = vcmp.eq.s32.totalorder %v519, 1
        %vm524 = vcmp.eq.s32.totalorder %v520, 1
        %v525 = vsel %vm521, %v514, %v480
        %v526 = vsel %vm522, %v511, %v481
        %v527 = vsel %vm523, %v508, %v482
        %v528 = vsel %vm524, %v505, %v483
        %v529 = vsel %vm521, %v515, %v484
        %v530 = vsel %vm522, %v512, %v485
        %v531 = vsel %vm523, %v509, %v486
        %v532 = vsel %vm524, %v506, %v487
        %v533 = vsel %vm521, %v516, %v488
        %v534 = vsel %vm522, %v513, %v489
        %v535 = vsel %vm523, %v510, %v490
        %v536 = vsel %vm524, %v507, %v491
        %v537 = vrot.slane %v525, 7
        %v538 = vrot.slane %v529, 7
        %v539 = vrot.slane %v533, 7
        %v540 = vrot.slane %v526, 7
        %v541 = vrot.slane %v530, 7
        %v542 = vrot.slane %v534, 7
        %v543 = vrot.slane %v527, 7
        %v544 = vrot.slane %v531, 7
        %v545 = vrot.slane %v535, 7
        %v546 = vrot.slane %v528, 7
        %v547 = vrot.slane %v532, 7
        %v548 = vrot.slane %v536, 7
        %v549 = vsel %vm504, %v543, %v546
        %v550 = vsel %vm504, %v544, %v547
        %v551 = vsel %vm504, %v545, %v548
        %v552 = vsel %vm504, %v540, %v543
        %v553 = vsel %vm504, %v541, %v544
        %v554 = vsel %vm504, %v542, %v545
        %v555 = vsel %vm504, %v537, %v540
        %v556 = vsel %vm504, %v538, %v541
        %v557 = vsel %vm504, %v539, %v542
        %v558 = vsel %vm504, %v546, %v537
        %v559 = vsel %vm504, %v547, %v538
        %v560 = vsel %vm504, %v548, %v539
        %v561 = vsel %vm521, %v558, %v480
        %v562 = vsel %vm522, %v555, %v481
        %v563 = vsel %vm523, %v552, %v482
        %v564 = vsel %vm524, %v549, %v483
        %v565 = vsel %vm521, %v559, %v484
        %v566 = vsel %vm522, %v556, %v485
        %v567 = vsel %vm523, %v553, %v486
        %v568 = vsel %vm524, %v550, %v487
        %v569 = vsel %vm521, %v560, %v488
        %v570 = vsel %vm522, %v557, %v489
        %v571 = vsel %vm523, %v554, %v490
        %v572 = vsel %vm524, %v551, %v491
        %v573 = vrot.slane %v480, 1
        %v574 = vrot.slane %v484, 1
        %v575 = vrot.slane %v488, 1
        %v576 = vrot.slane %v481, 1
        %v577 = vrot.slane %v485, 1
        %v578 = vrot.slane %v489, 1
        %v579 = vrot.slane %v482, 1
        %v580 = vrot.slane %v486, 1
        %v581 = vrot.slane %v490, 1
        %v582 = vrot.slane %v483, 1
        %v583 = vrot.slane %v487, 1
        %v584 = vrot.slane %v491, 1
        %vm585 = vcmp.lt.s32.totalorder %v206, 7
        %v586 = vsel %vm585, %v579, %v582
        %v587 = vsel %vm585, %v580, %v583
        %v588 = vsel %vm585, %v581, %v584
        %v589 = vsel %vm585, %v576, %v579
        %v590 = vsel %vm585, %v577, %v580
        %v591 = vsel %vm585, %v578, %v581
        %v592 = vsel %vm585, %v573, %v576
        %v593 = vsel %vm585, %v574, %v577
        %v594 = vsel %vm585, %v575, %v578
        %v595 = vsel %vm585, %v582, %v573
        %v596 = vsel %vm585, %v583, %v574
        %v597 = vsel %vm585, %v584, %v575
        %v598 = vsel %vm216, 1, 0
        %v599 = vsel %vm217, 1, 0
        %v600 = vsel %vm218, 1, 0
        %v601 = vsel %vm219, 1, 0
        %vm602 = vcmp.eq.s32.totalorder %v598, 1
        %vm603 = vcmp.eq.s32.totalorder %v599, 1
        %vm604 = vcmp.eq.s32.totalorder %v600, 1
        %vm605 = vcmp.eq.s32.totalorder %v601, 1
        %v606 = vsel %vm602, %v592, %v480
        %v607 = vsel %vm603, %v589, %v481
        %v608 = vsel %vm604, %v586, %v482
        %v609 = vsel %vm605, %v595, %v483
        %v610 = vsel %vm602, %v593, %v484
        %v611 = vsel %vm603, %v590, %v485
        %v612 = vsel %vm604, %v587, %v486
        %v613 = vsel %vm605, %v596, %v487
        %v614 = vsel %vm602, %v594, %v488
        %v615 = vsel %vm603, %v591, %v489
        %v616 = vsel %vm604, %v588, %v490
        %v617 = vsel %vm605, %v597, %v491
        %v618 = vrot.slane %v606, 1
        %v619 = vrot.slane %v610, 1
        %v620 = vrot.slane %v614, 1
        %v621 = vrot.slane %v607, 1
        %v622 = vrot.slane %v611, 1
        %v623 = vrot.slane %v615, 1
        %v624 = vrot.slane %v608, 1
        %v625 = vrot.slane %v612, 1
        %v626 = vrot.slane %v616, 1
        %v627 = vrot.slane %v609, 1
        %v628 = vrot.slane %v613, 1
        %v629 = vrot.slane %v617, 1
        %v630 = vsel %vm585, %v624, %v627
        %v631 = vsel %vm585, %v625, %v628
        %v632 = vsel %vm585, %v626, %v629
        %v633 = vsel %vm585, %v621, %v624
        %v634 = vsel %vm585, %v622, %v625
        %v635 = vsel %vm585, %v623, %v626
        %v636 = vsel %vm585, %v618, %v621
        %v637 = vsel %vm585, %v619, %v622
        %v638 = vsel %vm585, %v620, %v623
        %v639 = vsel %vm585, %v627, %v618
        %v640 = vsel %vm585, %v628, %v619
        %v641 = vsel %vm585, %v629, %v620
        %v642 = vsel %vm602, %v636, %v480
        %v643 = vsel %vm603, %v633, %v481
        %v644 = vsel %vm604, %v630, %v482
        %v645 = vsel %vm605, %v639, %v483
        %v646 = vsel %vm602, %v637, %v484
        %v647 = vsel %vm603, %v634, %v485
        %v648 = vsel %vm604, %v631, %v486
        %v649 = vsel %vm605, %v640, %v487
        %v650 = vsel %vm602, %v638, %v488
        %v651 = vsel %vm603, %v635, %v489
        %v652 = vsel %vm604, %v632, %v490
        %v653 = vsel %vm605, %v641, %v491
        %v654 = vmul.f32 %v480, 0.4
        %v655 = vmul.f32 %v481, 0.4
        %v656 = vmul.f32 %v482, 0.4
        %v657 = vmul.f32 %v483, 0.4
        %v658 = vmul.f32 %v484, 0.4
        %v659 = vmul.f32 %v485, 0.4
        %v660 = vmul.f32 %v486, 0.4
        %v661 = vmul.f32 %v487, 0.4
        %v662 = vmul.f32 %v488, 0.4
        %v663 = vmul.f32 %v489, 0.4
        %v664 = vmul.f32 %v490, 0.4
        %v665 = vmul.f32 %v491, 0.4
        %v666 = vadd.f32 %v525, %v606
        %v667 = vadd.f32 %v526, %v607
        %v668 = vadd.f32 %v527, %v608
        %v669 = vadd.f32 %v528, %v609
        %v670 = vadd.f32 %v529, %v610
        %v671 = vadd.f32 %v530, %v611
        %v672 = vadd.f32 %v531, %v612
        %v673 = vadd.f32 %v532, %v613
        %v674 = vadd.f32 %v533, %v614
        %v675 = vadd.f32 %v534, %v615
        %v676 = vadd.f32 %v535, %v616
        %v677 = vadd.f32 %v536, %v617
        %v678 = vmul.f32 %v666, 0.25
        %v679 = vmul.f32 %v667, 0.25
        %v680 = vmul.f32 %v668, 0.25
        %v681 = vmul.f32 %v669, 0.25
        %v682 = vmul.f32 %v670, 0.25
        %v683 = vmul.f32 %v671, 0.25
        %v684 = vmul.f32 %v672, 0.25
        %v685 = vmul.f32 %v673, 0.25
        %v686 = vmul.f32 %v674, 0.25
        %v687 = vmul.f32 %v675, 0.25
        %v688 = vmul.f32 %v676, 0.25
        %v689 = vmul.f32 %v677, 0.25
        %v690 = vadd.f32 %v654, %v678
        %v691 = vadd.f32 %v655, %v679
        %v692 = vadd.f32 %v656, %v680
        %v693 = vadd.f32 %v657, %v681
        %v694 = vadd.f32 %v658, %v682
        %v695 = vadd.f32 %v659, %v683
        %v696 = vadd.f32 %v660, %v684
        %v697 = vadd.f32 %v661, %v685
        %v698 = vadd.f32 %v662, %v686
        %v699 = vadd.f32 %v663, %v687
        %v700 = vadd.f32 %v664, %v688
        %v701 = vadd.f32 %v665, %v689
        %v702 = vadd.f32 %v561, %v642
        %v703 = vadd.f32 %v562, %v643
        %v704 = vadd.f32 %v563, %v644
        %v705 = vadd.f32 %v564, %v645
        %v706 = vadd.f32 %v565, %v646
        %v707 = vadd.f32 %v566, %v647
        %v708 = vadd.f32 %v567, %v648
        %v709 = vadd.f32 %v568, %v649
        %v710 = vadd.f32 %v569, %v650
        %v711 = vadd.f32 %v570, %v651
        %v712 = vadd.f32 %v571, %v652
        %v713 = vadd.f32 %v572, %v653
        %v714 = vmul.f32 %v702, 0.05
        %v715 = vmul.f32 %v703, 0.05
        %v716 = vmul.f32 %v704, 0.05
        %v717 = vmul.f32 %v705, 0.05
        %v718 = vmul.f32 %v706, 0.05
        %v719 = vmul.f32 %v707, 0.05
        %v720 = vmul.f32 %v708, 0.05
        %v721 = vmul.f32 %v709, 0.05
        %v722 = vmul.f32 %v710, 0.05
        %v723 = vmul.f32 %v711, 0.05
        %v724 = vmul.f32 %v712, 0.05
        %v725 = vmul.f32 %v713, 0.05
        %v726 = vadd.f32 %v690, %v714
        %v727 = vadd.f32 %v691, %v715
        %v728 = vadd.f32 %v692, %v716
        %v729 = vadd.f32 %v693, %v717
        %v730 = vadd.f32 %v694, %v718
        %v731 = vadd.f32 %v695, %v719
        %v732 = vadd.f32 %v696, %v720
        %v733 = vadd.f32 %v697, %v721
        %v734 = vadd.f32 %v698, %v722
        %v735 = vadd.f32 %v699, %v723
        %v736 = vadd.f32 %v700, %v724
        %v737 = vadd.f32 %v701, %v725
        %v738 = vmul.f32 %v726, 4.0
        %v739 = vmul.f32 %v727, 4.0
        %v740 = vmul.f32 %v728, 4.0
        %v741 = vmul.f32 %v729, 4.0
        %v742 = vmul.f32 %v730, 4.0
        %v743 = vmul.f32 %v731, 4.0
        %v744 = vmul.f32 %v732, 4.0
        %v745 = vmul.f32 %v733, 4.0
        %v746 = vmul.f32 %v734, 4.0
        %v747 = vmul.f32 %v735, 4.0
        %v748 = vmul.f32 %v736, 4.0
        %v749 = vmul.f32 %v737, 4.0
        %v750 = vsel %vm232, 1, 0
        %v751 = vsel %vm233, 1, 0
        %v752 = vsel %vm234, 1, 0
        %v753 = vsel %vm235, 1, 0
        %vm754 = vcmp.eq.s32.totalorder %v750, 1
        %vm755 = vcmp.eq.s32.totalorder %v751, 1
        %vm756 = vcmp.eq.s32.totalorder %v752, 1
        %vm757 = vcmp.eq.s32.totalorder %v753, 1
        %v758 = vsel %vm754, %v738, 0.0
        %v759 = vsel %vm755, %v739, 0.0
        %v760 = vsel %vm756, %v740, 0.0
        %v761 = vsel %vm757, %v741, 0.0
        %v762 = vsel %vm754, %v742, 0.0
        %v763 = vsel %vm755, %v743, 0.0
        %v764 = vsel %vm756, %v744, 0.0
        %v765 = vsel %vm757, %v745, 0.0
        %v766 = vsel %vm754, %v746, 0.0
        %v767 = vsel %vm755, %v747, 0.0
        %v768 = vsel %vm756, %v748, 0.0
        %v769 = vsel %vm757, %v749, 0.0
        %770 = vrot.lane.b32.xlu0 %v758, 1
        %v771 = vpop.permute.xlu0 %770
        %772 = vrot.lane.b32.xlu0 %v759, 1
        %v773 = vpop.permute.xlu0 %772
        %774 = vrot.lane.b32.xlu0 %v760, 1
        %v775 = vpop.permute.xlu0 %774
        %776 = vrot.lane.b32.xlu0 %v761, 1
        %v777 = vpop.permute.xlu0 %776
        %778 = vrot.lane.b32.xlu0 %v762, 1
        %v779 = vpop.permute.xlu0 %778
        %780 = vrot.lane.b32.xlu0 %v763, 1
        %v781 = vpop.permute.xlu0 %780
        %782 = vrot.lane.b32.xlu0 %v764, 1
        %v783 = vpop.permute.xlu0 %782
        %784 = vrot.lane.b32.xlu0 %v765, 1
        %v785 = vpop.permute.xlu0 %784
        %786 = vrot.lane.b32.xlu0 %v766, 1
        %v787 = vpop.permute.xlu0 %786
        %788 = vrot.lane.b32.xlu0 %v767, 1
        %v789 = vpop.permute.xlu0 %788
        %790 = vrot.lane.b32.xlu0 %v768, 1
        %v791 = vpop.permute.xlu0 %790
        %792 = vrot.lane.b32.xlu0 %v769, 1
        %v793 = vpop.permute.xlu0 %792
        %v794 = vsel %vm285, %v771, %v758
        %v795 = vsel %vm285, %v773, %v759
        %v796 = vsel %vm285, %v775, %v760
        %v797 = vsel %vm285, %v777, %v761
        %v798 = vsel %vm285, %v779, %v762
        %v799 = vsel %vm285, %v781, %v763
        %v800 = vsel %vm285, %v783, %v764
        %v801 = vsel %vm285, %v785, %v765
        %v802 = vsel %vm285, %v787, %v766
        %v803 = vsel %vm285, %v789, %v767
        %v804 = vsel %vm285, %v791, %v768
        %v805 = vsel %vm285, %v793, %v769
        %806 = vrot.lane.b32.xlu0 %v794, 1
        %v807 = vpop.permute.xlu0 %806
        %808 = vrot.lane.b32.xlu0 %v795, 1
        %v809 = vpop.permute.xlu0 %808
        %810 = vrot.lane.b32.xlu0 %v796, 1
        %v811 = vpop.permute.xlu0 %810
        %812 = vrot.lane.b32.xlu0 %v797, 1
        %v813 = vpop.permute.xlu0 %812
        %814 = vrot.lane.b32.xlu0 %v798, 1
        %v815 = vpop.permute.xlu0 %814
        %816 = vrot.lane.b32.xlu0 %v799, 1
        %v817 = vpop.permute.xlu0 %816
        %818 = vrot.lane.b32.xlu0 %v800, 1
        %v819 = vpop.permute.xlu0 %818
        %820 = vrot.lane.b32.xlu0 %v801, 1
        %v821 = vpop.permute.xlu0 %820
        %822 = vrot.lane.b32.xlu0 %v802, 1
        %v823 = vpop.permute.xlu0 %822
        %824 = vrot.lane.b32.xlu0 %v803, 1
        %v825 = vpop.permute.xlu0 %824
        %826 = vrot.lane.b32.xlu0 %v804, 1
        %v827 = vpop.permute.xlu0 %826
        %828 = vrot.lane.b32.xlu0 %v805, 1
        %v829 = vpop.permute.xlu0 %828
        %v830 = vsel %vm285, %v807, %v758
        %v831 = vsel %vm285, %v809, %v759
        %v832 = vsel %vm285, %v811, %v760
        %v833 = vsel %vm285, %v813, %v761
        %v834 = vsel %vm285, %v815, %v762
        %v835 = vsel %vm285, %v817, %v763
        %v836 = vsel %vm285, %v819, %v764
        %v837 = vsel %vm285, %v821, %v765
        %v838 = vsel %vm285, %v823, %v766
        %v839 = vsel %vm285, %v825, %v767
        %v840 = vsel %vm285, %v827, %v768
        %v841 = vsel %vm285, %v829, %v769
        %842 = vrot.lane.b32.xlu0 %v758, 127
        %v843 = vpop.permute.xlu0 %842
        %844 = vrot.lane.b32.xlu0 %v759, 127
        %v845 = vpop.permute.xlu0 %844
        %846 = vrot.lane.b32.xlu0 %v760, 127
        %v847 = vpop.permute.xlu0 %846
        %848 = vrot.lane.b32.xlu0 %v761, 127
        %v849 = vpop.permute.xlu0 %848
        %850 = vrot.lane.b32.xlu0 %v762, 127
        %v851 = vpop.permute.xlu0 %850
        %852 = vrot.lane.b32.xlu0 %v763, 127
        %v853 = vpop.permute.xlu0 %852
        %854 = vrot.lane.b32.xlu0 %v764, 127
        %v855 = vpop.permute.xlu0 %854
        %856 = vrot.lane.b32.xlu0 %v765, 127
        %v857 = vpop.permute.xlu0 %856
        %858 = vrot.lane.b32.xlu0 %v766, 127
        %v859 = vpop.permute.xlu0 %858
        %860 = vrot.lane.b32.xlu0 %v767, 127
        %v861 = vpop.permute.xlu0 %860
        %862 = vrot.lane.b32.xlu0 %v768, 127
        %v863 = vpop.permute.xlu0 %862
        %864 = vrot.lane.b32.xlu0 %v769, 127
        %v865 = vpop.permute.xlu0 %864
        %v866 = vsel %vm359, %v843, %v758
        %v867 = vsel %vm359, %v845, %v759
        %v868 = vsel %vm359, %v847, %v760
        %v869 = vsel %vm359, %v849, %v761
        %v870 = vsel %vm359, %v851, %v762
        %v871 = vsel %vm359, %v853, %v763
        %v872 = vsel %vm359, %v855, %v764
        %v873 = vsel %vm359, %v857, %v765
        %v874 = vsel %vm359, %v859, %v766
        %v875 = vsel %vm359, %v861, %v767
        %v876 = vsel %vm359, %v863, %v768
        %v877 = vsel %vm359, %v865, %v769
        %878 = vrot.lane.b32.xlu0 %v866, 127
        %v879 = vpop.permute.xlu0 %878
        %880 = vrot.lane.b32.xlu0 %v867, 127
        %v881 = vpop.permute.xlu0 %880
        %882 = vrot.lane.b32.xlu0 %v868, 127
        %v883 = vpop.permute.xlu0 %882
        %884 = vrot.lane.b32.xlu0 %v869, 127
        %v885 = vpop.permute.xlu0 %884
        %886 = vrot.lane.b32.xlu0 %v870, 127
        %v887 = vpop.permute.xlu0 %886
        %888 = vrot.lane.b32.xlu0 %v871, 127
        %v889 = vpop.permute.xlu0 %888
        %890 = vrot.lane.b32.xlu0 %v872, 127
        %v891 = vpop.permute.xlu0 %890
        %892 = vrot.lane.b32.xlu0 %v873, 127
        %v893 = vpop.permute.xlu0 %892
        %894 = vrot.lane.b32.xlu0 %v874, 127
        %v895 = vpop.permute.xlu0 %894
        %896 = vrot.lane.b32.xlu0 %v875, 127
        %v897 = vpop.permute.xlu0 %896
        %898 = vrot.lane.b32.xlu0 %v876, 127
        %v899 = vpop.permute.xlu0 %898
        %900 = vrot.lane.b32.xlu0 %v877, 127
        %v901 = vpop.permute.xlu0 %900
        %v902 = vsel %vm359, %v879, %v758
        %v903 = vsel %vm359, %v881, %v759
        %v904 = vsel %vm359, %v883, %v760
        %v905 = vsel %vm359, %v885, %v761
        %v906 = vsel %vm359, %v887, %v762
        %v907 = vsel %vm359, %v889, %v763
        %v908 = vsel %vm359, %v891, %v764
        %v909 = vsel %vm359, %v893, %v765
        %v910 = vsel %vm359, %v895, %v766
        %v911 = vsel %vm359, %v897, %v767
        %v912 = vsel %vm359, %v899, %v768
        %v913 = vsel %vm359, %v901, %v769
        %v914 = vmul.f32 %v758, 0.4
        %v915 = vmul.f32 %v759, 0.4
        %v916 = vmul.f32 %v760, 0.4
        %v917 = vmul.f32 %v761, 0.4
        %v918 = vmul.f32 %v762, 0.4
        %v919 = vmul.f32 %v763, 0.4
        %v920 = vmul.f32 %v764, 0.4
        %v921 = vmul.f32 %v765, 0.4
        %v922 = vmul.f32 %v766, 0.4
        %v923 = vmul.f32 %v767, 0.4
        %v924 = vmul.f32 %v768, 0.4
        %v925 = vmul.f32 %v769, 0.4
        %v926 = vadd.f32 %v794, %v866
        %v927 = vadd.f32 %v795, %v867
        %v928 = vadd.f32 %v796, %v868
        %v929 = vadd.f32 %v797, %v869
        %v930 = vadd.f32 %v798, %v870
        %v931 = vadd.f32 %v799, %v871
        %v932 = vadd.f32 %v800, %v872
        %v933 = vadd.f32 %v801, %v873
        %v934 = vadd.f32 %v802, %v874
        %v935 = vadd.f32 %v803, %v875
        %v936 = vadd.f32 %v804, %v876
        %v937 = vadd.f32 %v805, %v877
        %v938 = vmul.f32 %v926, 0.25
        %v939 = vmul.f32 %v927, 0.25
        %v940 = vmul.f32 %v928, 0.25
        %v941 = vmul.f32 %v929, 0.25
        %v942 = vmul.f32 %v930, 0.25
        %v943 = vmul.f32 %v931, 0.25
        %v944 = vmul.f32 %v932, 0.25
        %v945 = vmul.f32 %v933, 0.25
        %v946 = vmul.f32 %v934, 0.25
        %v947 = vmul.f32 %v935, 0.25
        %v948 = vmul.f32 %v936, 0.25
        %v949 = vmul.f32 %v937, 0.25
        %v950 = vadd.f32 %v914, %v938
        %v951 = vadd.f32 %v915, %v939
        %v952 = vadd.f32 %v916, %v940
        %v953 = vadd.f32 %v917, %v941
        %v954 = vadd.f32 %v918, %v942
        %v955 = vadd.f32 %v919, %v943
        %v956 = vadd.f32 %v920, %v944
        %v957 = vadd.f32 %v921, %v945
        %v958 = vadd.f32 %v922, %v946
        %v959 = vadd.f32 %v923, %v947
        %v960 = vadd.f32 %v924, %v948
        %v961 = vadd.f32 %v925, %v949
        %v962 = vadd.f32 %v830, %v902
        %v963 = vadd.f32 %v831, %v903
        %v964 = vadd.f32 %v832, %v904
        %v965 = vadd.f32 %v833, %v905
        %v966 = vadd.f32 %v834, %v906
        %v967 = vadd.f32 %v835, %v907
        %v968 = vadd.f32 %v836, %v908
        %v969 = vadd.f32 %v837, %v909
        %v970 = vadd.f32 %v838, %v910
        %v971 = vadd.f32 %v839, %v911
        %v972 = vadd.f32 %v840, %v912
        %v973 = vadd.f32 %v841, %v913
        %v974 = vmul.f32 %v962, 0.05
        %v975 = vmul.f32 %v963, 0.05
        %v976 = vmul.f32 %v964, 0.05
        %v977 = vmul.f32 %v965, 0.05
        %v978 = vmul.f32 %v966, 0.05
        %v979 = vmul.f32 %v967, 0.05
        %v980 = vmul.f32 %v968, 0.05
        %v981 = vmul.f32 %v969, 0.05
        %v982 = vmul.f32 %v970, 0.05
        %v983 = vmul.f32 %v971, 0.05
        %v984 = vmul.f32 %v972, 0.05
        %v985 = vmul.f32 %v973, 0.05
        %v986 = vadd.f32 %v950, %v974
        %v987 = vadd.f32 %v951, %v975
        %v988 = vadd.f32 %v952, %v976
        %v989 = vadd.f32 %v953, %v977
        %v990 = vadd.f32 %v954, %v978
        %v991 = vadd.f32 %v955, %v979
        %v992 = vadd.f32 %v956, %v980
        %v993 = vadd.f32 %v957, %v981
        %v994 = vadd.f32 %v958, %v982
        %v995 = vadd.f32 %v959, %v983
        %v996 = vadd.f32 %v960, %v984
        %v997 = vadd.f32 %v961, %v985
        %v998 = vrot.slane %v986, 7
        %v999 = vrot.slane %v990, 7
        %v1000 = vrot.slane %v994, 7
        %v1001 = vrot.slane %v987, 7
        %v1002 = vrot.slane %v991, 7
        %v1003 = vrot.slane %v995, 7
        %v1004 = vrot.slane %v988, 7
        %v1005 = vrot.slane %v992, 7
        %v1006 = vrot.slane %v996, 7
        %v1007 = vrot.slane %v989, 7
        %v1008 = vrot.slane %v993, 7
        %v1009 = vrot.slane %v997, 7
        %v1010 = vsel %vm504, %v1004, %v1007
        %v1011 = vsel %vm504, %v1005, %v1008
        %v1012 = vsel %vm504, %v1006, %v1009
        %v1013 = vsel %vm504, %v1001, %v1004
        %v1014 = vsel %vm504, %v1002, %v1005
        %v1015 = vsel %vm504, %v1003, %v1006
        %v1016 = vsel %vm504, %v998, %v1001
        %v1017 = vsel %vm504, %v999, %v1002
        %v1018 = vsel %vm504, %v1000, %v1003
        %v1019 = vsel %vm504, %v1007, %v998
        %v1020 = vsel %vm504, %v1008, %v999
        %v1021 = vsel %vm504, %v1009, %v1000
        %v1022 = vsel %vm521, %v1019, %v986
        %v1023 = vsel %vm522, %v1016, %v987
        %v1024 = vsel %vm523, %v1013, %v988
        %v1025 = vsel %vm524, %v1010, %v989
        %v1026 = vsel %vm521, %v1020, %v990
        %v1027 = vsel %vm522, %v1017, %v991
        %v1028 = vsel %vm523, %v1014, %v992
        %v1029 = vsel %vm524, %v1011, %v993
        %v1030 = vsel %vm521, %v1021, %v994
        %v1031 = vsel %vm522, %v1018, %v995
        %v1032 = vsel %vm523, %v1015, %v996
        %v1033 = vsel %vm524, %v1012, %v997
        %v1034 = vrot.slane %v1022, 7
        %v1035 = vrot.slane %v1026, 7
        %v1036 = vrot.slane %v1030, 7
        %v1037 = vrot.slane %v1023, 7
        %v1038 = vrot.slane %v1027, 7
        %v1039 = vrot.slane %v1031, 7
        %v1040 = vrot.slane %v1024, 7
        %v1041 = vrot.slane %v1028, 7
        %v1042 = vrot.slane %v1032, 7
        %v1043 = vrot.slane %v1025, 7
        %v1044 = vrot.slane %v1029, 7
        %v1045 = vrot.slane %v1033, 7
        %v1046 = vsel %vm504, %v1040, %v1043
        %v1047 = vsel %vm504, %v1041, %v1044
        %v1048 = vsel %vm504, %v1042, %v1045
        %v1049 = vsel %vm504, %v1037, %v1040
        %v1050 = vsel %vm504, %v1038, %v1041
        %v1051 = vsel %vm504, %v1039, %v1042
        %v1052 = vsel %vm504, %v1034, %v1037
        %v1053 = vsel %vm504, %v1035, %v1038
        %v1054 = vsel %vm504, %v1036, %v1039
        %v1055 = vsel %vm504, %v1043, %v1034
        %v1056 = vsel %vm504, %v1044, %v1035
        %v1057 = vsel %vm504, %v1045, %v1036
        %v1058 = vsel %vm521, %v1055, %v986
        %v1059 = vsel %vm522, %v1052, %v987
        %v1060 = vsel %vm523, %v1049, %v988
        %v1061 = vsel %vm524, %v1046, %v989
        %v1062 = vsel %vm521, %v1056, %v990
        %v1063 = vsel %vm522, %v1053, %v991
        %v1064 = vsel %vm523, %v1050, %v992
        %v1065 = vsel %vm524, %v1047, %v993
        %v1066 = vsel %vm521, %v1057, %v994
        %v1067 = vsel %vm522, %v1054, %v995
        %v1068 = vsel %vm523, %v1051, %v996
        %v1069 = vsel %vm524, %v1048, %v997
        %v1070 = vrot.slane %v986, 1
        %v1071 = vrot.slane %v990, 1
        %v1072 = vrot.slane %v994, 1
        %v1073 = vrot.slane %v987, 1
        %v1074 = vrot.slane %v991, 1
        %v1075 = vrot.slane %v995, 1
        %v1076 = vrot.slane %v988, 1
        %v1077 = vrot.slane %v992, 1
        %v1078 = vrot.slane %v996, 1
        %v1079 = vrot.slane %v989, 1
        %v1080 = vrot.slane %v993, 1
        %v1081 = vrot.slane %v997, 1
        %v1082 = vsel %vm585, %v1076, %v1079
        %v1083 = vsel %vm585, %v1077, %v1080
        %v1084 = vsel %vm585, %v1078, %v1081
        %v1085 = vsel %vm585, %v1073, %v1076
        %v1086 = vsel %vm585, %v1074, %v1077
        %v1087 = vsel %vm585, %v1075, %v1078
        %v1088 = vsel %vm585, %v1070, %v1073
        %v1089 = vsel %vm585, %v1071, %v1074
        %v1090 = vsel %vm585, %v1072, %v1075
        %v1091 = vsel %vm585, %v1079, %v1070
        %v1092 = vsel %vm585, %v1080, %v1071
        %v1093 = vsel %vm585, %v1081, %v1072
        %v1094 = vsel %vm602, %v1088, %v986
        %v1095 = vsel %vm603, %v1085, %v987
        %v1096 = vsel %vm604, %v1082, %v988
        %v1097 = vsel %vm605, %v1091, %v989
        %v1098 = vsel %vm602, %v1089, %v990
        %v1099 = vsel %vm603, %v1086, %v991
        %v1100 = vsel %vm604, %v1083, %v992
        %v1101 = vsel %vm605, %v1092, %v993
        %v1102 = vsel %vm602, %v1090, %v994
        %v1103 = vsel %vm603, %v1087, %v995
        %v1104 = vsel %vm604, %v1084, %v996
        %v1105 = vsel %vm605, %v1093, %v997
        %v1106 = vrot.slane %v1094, 1
        %v1107 = vrot.slane %v1098, 1
        %v1108 = vrot.slane %v1102, 1
        %v1109 = vrot.slane %v1095, 1
        %v1110 = vrot.slane %v1099, 1
        %v1111 = vrot.slane %v1103, 1
        %v1112 = vrot.slane %v1096, 1
        %v1113 = vrot.slane %v1100, 1
        %v1114 = vrot.slane %v1104, 1
        %v1115 = vrot.slane %v1097, 1
        %v1116 = vrot.slane %v1101, 1
        %v1117 = vrot.slane %v1105, 1
        %v1118 = vsel %vm585, %v1112, %v1115
        %v1119 = vsel %vm585, %v1113, %v1116
        %v1120 = vsel %vm585, %v1114, %v1117
        %v1121 = vsel %vm585, %v1109, %v1112
        %v1122 = vsel %vm585, %v1110, %v1113
        %v1123 = vsel %vm585, %v1111, %v1114
        %v1124 = vsel %vm585, %v1106, %v1109
        %v1125 = vsel %vm585, %v1107, %v1110
        %v1126 = vsel %vm585, %v1108, %v1111
        %v1127 = vsel %vm585, %v1115, %v1106
        %v1128 = vsel %vm585, %v1116, %v1107
        %v1129 = vsel %vm585, %v1117, %v1108
        %v1130 = vsel %vm602, %v1124, %v986
        %v1131 = vsel %vm603, %v1121, %v987
        %v1132 = vsel %vm604, %v1118, %v988
        %v1133 = vsel %vm605, %v1127, %v989
        %v1134 = vsel %vm602, %v1125, %v990
        %v1135 = vsel %vm603, %v1122, %v991
        %v1136 = vsel %vm604, %v1119, %v992
        %v1137 = vsel %vm605, %v1128, %v993
        %v1138 = vsel %vm602, %v1126, %v994
        %v1139 = vsel %vm603, %v1123, %v995
        %v1140 = vsel %vm604, %v1120, %v996
        %v1141 = vsel %vm605, %v1129, %v997
        %v1142 = vmul.f32 %v986, 0.4
        %v1143 = vmul.f32 %v987, 0.4
        %v1144 = vmul.f32 %v988, 0.4
        %v1145 = vmul.f32 %v989, 0.4
        %v1146 = vmul.f32 %v990, 0.4
        %v1147 = vmul.f32 %v991, 0.4
        %v1148 = vmul.f32 %v992, 0.4
        %v1149 = vmul.f32 %v993, 0.4
        %v1150 = vmul.f32 %v994, 0.4
        %v1151 = vmul.f32 %v995, 0.4
        %v1152 = vmul.f32 %v996, 0.4
        %v1153 = vmul.f32 %v997, 0.4
        %v1154 = vadd.f32 %v1022, %v1094
        %v1155 = vadd.f32 %v1023, %v1095
        %v1156 = vadd.f32 %v1024, %v1096
        %v1157 = vadd.f32 %v1025, %v1097
        %v1158 = vadd.f32 %v1026, %v1098
        %v1159 = vadd.f32 %v1027, %v1099
        %v1160 = vadd.f32 %v1028, %v1100
        %v1161 = vadd.f32 %v1029, %v1101
        %v1162 = vadd.f32 %v1030, %v1102
        %v1163 = vadd.f32 %v1031, %v1103
        %v1164 = vadd.f32 %v1032, %v1104
        %v1165 = vadd.f32 %v1033, %v1105
        %v1166 = vmul.f32 %v1154, 0.25
        %v1167 = vmul.f32 %v1155, 0.25
        %v1168 = vmul.f32 %v1156, 0.25
        %v1169 = vmul.f32 %v1157, 0.25
        %v1170 = vmul.f32 %v1158, 0.25
        %v1171 = vmul.f32 %v1159, 0.25
        %v1172 = vmul.f32 %v1160, 0.25
        %v1173 = vmul.f32 %v1161, 0.25
        %v1174 = vmul.f32 %v1162, 0.25
        %v1175 = vmul.f32 %v1163, 0.25
        %v1176 = vmul.f32 %v1164, 0.25
        %v1177 = vmul.f32 %v1165, 0.25
        %v1178 = vadd.f32 %v1142, %v1166
        %v1179 = vadd.f32 %v1143, %v1167
        %v1180 = vadd.f32 %v1144, %v1168
        %v1181 = vadd.f32 %v1145, %v1169
        %v1182 = vadd.f32 %v1146, %v1170
        %v1183 = vadd.f32 %v1147, %v1171
        %v1184 = vadd.f32 %v1148, %v1172
        %v1185 = vadd.f32 %v1149, %v1173
        %v1186 = vadd.f32 %v1150, %v1174
        %v1187 = vadd.f32 %v1151, %v1175
        %v1188 = vadd.f32 %v1152, %v1176
        %v1189 = vadd.f32 %v1153, %v1177
        %v1190 = vadd.f32 %v1058, %v1130
        %v1191 = vadd.f32 %v1059, %v1131
        %v1192 = vadd.f32 %v1060, %v1132
        %v1193 = vadd.f32 %v1061, %v1133
        %v1194 = vadd.f32 %v1062, %v1134
        %v1195 = vadd.f32 %v1063, %v1135
        %v1196 = vadd.f32 %v1064, %v1136
        %v1197 = vadd.f32 %v1065, %v1137
        %v1198 = vadd.f32 %v1066, %v1138
        %v1199 = vadd.f32 %v1067, %v1139
        %v1200 = vadd.f32 %v1068, %v1140
        %v1201 = vadd.f32 %v1069, %v1141
        %v1202 = vmul.f32 %v1190, 0.05
        %v1203 = vmul.f32 %v1191, 0.05
        %v1204 = vmul.f32 %v1192, 0.05
        %v1205 = vmul.f32 %v1193, 0.05
        %v1206 = vmul.f32 %v1194, 0.05
        %v1207 = vmul.f32 %v1195, 0.05
        %v1208 = vmul.f32 %v1196, 0.05
        %v1209 = vmul.f32 %v1197, 0.05
        %v1210 = vmul.f32 %v1198, 0.05
        %v1211 = vmul.f32 %v1199, 0.05
        %v1212 = vmul.f32 %v1200, 0.05
        %v1213 = vmul.f32 %v1201, 0.05
        %v1214 = vadd.f32 %v1178, %v1202
        %v1215 = vadd.f32 %v1179, %v1203
        %v1216 = vadd.f32 %v1180, %v1204
        %v1217 = vadd.f32 %v1181, %v1205
        %v1218 = vadd.f32 %v1182, %v1206
        %v1219 = vadd.f32 %v1183, %v1207
        %v1220 = vadd.f32 %v1184, %v1208
        %v1221 = vadd.f32 %v1185, %v1209
        %v1222 = vadd.f32 %v1186, %v1210
        %v1223 = vadd.f32 %v1187, %v1211
        %v1224 = vadd.f32 %v1188, %v1212
        %v1225 = vadd.f32 %v1189, %v1213
        %v1226 = vsub.f32 %v236, %v1214
        %v1227 = vsub.f32 %v237, %v1215
        %v1228 = vsub.f32 %v238, %v1216
        %v1229 = vsub.f32 %v239, %v1217
        %v1230 = vsub.f32 %v240, %v1218
        %v1231 = vsub.f32 %v241, %v1219
        %v1232 = vsub.f32 %v242, %v1220
        %v1233 = vsub.f32 %v243, %v1221
        %v1234 = vsub.f32 %v244, %v1222
        %v1235 = vsub.f32 %v245, %v1223
        %v1236 = vsub.f32 %v246, %v1224
        %v1237 = vsub.f32 %v247, %v1225
        %1238 = vrot.lane.b32.xlu0 %v248, 1
        %v1239 = vpop.permute.xlu0 %1238
        %1240 = vrot.lane.b32.xlu0 %v249, 1
        %v1241 = vpop.permute.xlu0 %1240
        %1242 = vrot.lane.b32.xlu0 %v250, 1
        %v1243 = vpop.permute.xlu0 %1242
        %1244 = vrot.lane.b32.xlu0 %v251, 1
        %v1245 = vpop.permute.xlu0 %1244
        %1246 = vrot.lane.b32.xlu0 %v252, 1
        %v1247 = vpop.permute.xlu0 %1246
        %1248 = vrot.lane.b32.xlu0 %v253, 1
        %v1249 = vpop.permute.xlu0 %1248
        %1250 = vrot.lane.b32.xlu0 %v254, 1
        %v1251 = vpop.permute.xlu0 %1250
        %1252 = vrot.lane.b32.xlu0 %v255, 1
        %v1253 = vpop.permute.xlu0 %1252
        %1254 = vrot.lane.b32.xlu0 %v256, 1
        %v1255 = vpop.permute.xlu0 %1254
        %1256 = vrot.lane.b32.xlu0 %v257, 1
        %v1257 = vpop.permute.xlu0 %1256
        %1258 = vrot.lane.b32.xlu0 %v258, 1
        %v1259 = vpop.permute.xlu0 %1258
        %1260 = vrot.lane.b32.xlu0 %v259, 1
        %v1261 = vpop.permute.xlu0 %1260
        %v1262 = vsel %vm285, %v1239, %v248
        %v1263 = vsel %vm285, %v1241, %v249
        %v1264 = vsel %vm285, %v1243, %v250
        %v1265 = vsel %vm285, %v1245, %v251
        %v1266 = vsel %vm285, %v1247, %v252
        %v1267 = vsel %vm285, %v1249, %v253
        %v1268 = vsel %vm285, %v1251, %v254
        %v1269 = vsel %vm285, %v1253, %v255
        %v1270 = vsel %vm285, %v1255, %v256
        %v1271 = vsel %vm285, %v1257, %v257
        %v1272 = vsel %vm285, %v1259, %v258
        %v1273 = vsel %vm285, %v1261, %v259
        %1274 = vrot.lane.b32.xlu0 %v1262, 1
        %v1275 = vpop.permute.xlu0 %1274
        %1276 = vrot.lane.b32.xlu0 %v1263, 1
        %v1277 = vpop.permute.xlu0 %1276
        %1278 = vrot.lane.b32.xlu0 %v1264, 1
        %v1279 = vpop.permute.xlu0 %1278
        %1280 = vrot.lane.b32.xlu0 %v1265, 1
        %v1281 = vpop.permute.xlu0 %1280
        %1282 = vrot.lane.b32.xlu0 %v1266, 1
        %v1283 = vpop.permute.xlu0 %1282
        %1284 = vrot.lane.b32.xlu0 %v1267, 1
        %v1285 = vpop.permute.xlu0 %1284
        %1286 = vrot.lane.b32.xlu0 %v1268, 1
        %v1287 = vpop.permute.xlu0 %1286
        %1288 = vrot.lane.b32.xlu0 %v1269, 1
        %v1289 = vpop.permute.xlu0 %1288
        %1290 = vrot.lane.b32.xlu0 %v1270, 1
        %v1291 = vpop.permute.xlu0 %1290
        %1292 = vrot.lane.b32.xlu0 %v1271, 1
        %v1293 = vpop.permute.xlu0 %1292
        %1294 = vrot.lane.b32.xlu0 %v1272, 1
        %v1295 = vpop.permute.xlu0 %1294
        %1296 = vrot.lane.b32.xlu0 %v1273, 1
        %v1297 = vpop.permute.xlu0 %1296
        %v1298 = vsel %vm285, %v1275, %v248
        %v1299 = vsel %vm285, %v1277, %v249
        %v1300 = vsel %vm285, %v1279, %v250
        %v1301 = vsel %vm285, %v1281, %v251
        %v1302 = vsel %vm285, %v1283, %v252
        %v1303 = vsel %vm285, %v1285, %v253
        %v1304 = vsel %vm285, %v1287, %v254
        %v1305 = vsel %vm285, %v1289, %v255
        %v1306 = vsel %vm285, %v1291, %v256
        %v1307 = vsel %vm285, %v1293, %v257
        %v1308 = vsel %vm285, %v1295, %v258
        %v1309 = vsel %vm285, %v1297, %v259
        %1310 = vrot.lane.b32.xlu0 %v248, 127
        %v1311 = vpop.permute.xlu0 %1310
        %1312 = vrot.lane.b32.xlu0 %v249, 127
        %v1313 = vpop.permute.xlu0 %1312
        %1314 = vrot.lane.b32.xlu0 %v250, 127
        %v1315 = vpop.permute.xlu0 %1314
        %1316 = vrot.lane.b32.xlu0 %v251, 127
        %v1317 = vpop.permute.xlu0 %1316
        %1318 = vrot.lane.b32.xlu0 %v252, 127
        %v1319 = vpop.permute.xlu0 %1318
        %1320 = vrot.lane.b32.xlu0 %v253, 127
        %v1321 = vpop.permute.xlu0 %1320
        %1322 = vrot.lane.b32.xlu0 %v254, 127
        %v1323 = vpop.permute.xlu0 %1322
        %1324 = vrot.lane.b32.xlu0 %v255, 127
        %v1325 = vpop.permute.xlu0 %1324
        %1326 = vrot.lane.b32.xlu0 %v256, 127
        %v1327 = vpop.permute.xlu0 %1326
        %1328 = vrot.lane.b32.xlu0 %v257, 127
        %v1329 = vpop.permute.xlu0 %1328
        %1330 = vrot.lane.b32.xlu0 %v258, 127
        %v1331 = vpop.permute.xlu0 %1330
        %1332 = vrot.lane.b32.xlu0 %v259, 127
        %v1333 = vpop.permute.xlu0 %1332
        %v1334 = vsel %vm359, %v1311, %v248
        %v1335 = vsel %vm359, %v1313, %v249
        %v1336 = vsel %vm359, %v1315, %v250
        %v1337 = vsel %vm359, %v1317, %v251
        %v1338 = vsel %vm359, %v1319, %v252
        %v1339 = vsel %vm359, %v1321, %v253
        %v1340 = vsel %vm359, %v1323, %v254
        %v1341 = vsel %vm359, %v1325, %v255
        %v1342 = vsel %vm359, %v1327, %v256
        %v1343 = vsel %vm359, %v1329, %v257
        %v1344 = vsel %vm359, %v1331, %v258
        %v1345 = vsel %vm359, %v1333, %v259
        %1346 = vrot.lane.b32.xlu0 %v1334, 127
        %v1347 = vpop.permute.xlu0 %1346
        %1348 = vrot.lane.b32.xlu0 %v1335, 127
        %v1349 = vpop.permute.xlu0 %1348
        %1350 = vrot.lane.b32.xlu0 %v1336, 127
        %v1351 = vpop.permute.xlu0 %1350
        %1352 = vrot.lane.b32.xlu0 %v1337, 127
        %v1353 = vpop.permute.xlu0 %1352
        %1354 = vrot.lane.b32.xlu0 %v1338, 127
        %v1355 = vpop.permute.xlu0 %1354
        %1356 = vrot.lane.b32.xlu0 %v1339, 127
        %v1357 = vpop.permute.xlu0 %1356
        %1358 = vrot.lane.b32.xlu0 %v1340, 127
        %v1359 = vpop.permute.xlu0 %1358
        %1360 = vrot.lane.b32.xlu0 %v1341, 127
        %v1361 = vpop.permute.xlu0 %1360
        %1362 = vrot.lane.b32.xlu0 %v1342, 127
        %v1363 = vpop.permute.xlu0 %1362
        %1364 = vrot.lane.b32.xlu0 %v1343, 127
        %v1365 = vpop.permute.xlu0 %1364
        %1366 = vrot.lane.b32.xlu0 %v1344, 127
        %v1367 = vpop.permute.xlu0 %1366
        %1368 = vrot.lane.b32.xlu0 %v1345, 127
        %v1369 = vpop.permute.xlu0 %1368
        %v1370 = vsel %vm359, %v1347, %v248
        %v1371 = vsel %vm359, %v1349, %v249
        %v1372 = vsel %vm359, %v1351, %v250
        %v1373 = vsel %vm359, %v1353, %v251
        %v1374 = vsel %vm359, %v1355, %v252
        %v1375 = vsel %vm359, %v1357, %v253
        %v1376 = vsel %vm359, %v1359, %v254
        %v1377 = vsel %vm359, %v1361, %v255
        %v1378 = vsel %vm359, %v1363, %v256
        %v1379 = vsel %vm359, %v1365, %v257
        %v1380 = vsel %vm359, %v1367, %v258
        %v1381 = vsel %vm359, %v1369, %v259
        %v1382 = vmul.f32 %v248, 0.4
        %v1383 = vmul.f32 %v249, 0.4
        %v1384 = vmul.f32 %v250, 0.4
        %v1385 = vmul.f32 %v251, 0.4
        %v1386 = vmul.f32 %v252, 0.4
        %v1387 = vmul.f32 %v253, 0.4
        %v1388 = vmul.f32 %v254, 0.4
        %v1389 = vmul.f32 %v255, 0.4
        %v1390 = vmul.f32 %v256, 0.4
        %v1391 = vmul.f32 %v257, 0.4
        %v1392 = vmul.f32 %v258, 0.4
        %v1393 = vmul.f32 %v259, 0.4
        %v1394 = vadd.f32 %v1262, %v1334
        %v1395 = vadd.f32 %v1263, %v1335
        %v1396 = vadd.f32 %v1264, %v1336
        %v1397 = vadd.f32 %v1265, %v1337
        %v1398 = vadd.f32 %v1266, %v1338
        %v1399 = vadd.f32 %v1267, %v1339
        %v1400 = vadd.f32 %v1268, %v1340
        %v1401 = vadd.f32 %v1269, %v1341
        %v1402 = vadd.f32 %v1270, %v1342
        %v1403 = vadd.f32 %v1271, %v1343
        %v1404 = vadd.f32 %v1272, %v1344
        %v1405 = vadd.f32 %v1273, %v1345
        %v1406 = vmul.f32 %v1394, 0.25
        %v1407 = vmul.f32 %v1395, 0.25
        %v1408 = vmul.f32 %v1396, 0.25
        %v1409 = vmul.f32 %v1397, 0.25
        %v1410 = vmul.f32 %v1398, 0.25
        %v1411 = vmul.f32 %v1399, 0.25
        %v1412 = vmul.f32 %v1400, 0.25
        %v1413 = vmul.f32 %v1401, 0.25
        %v1414 = vmul.f32 %v1402, 0.25
        %v1415 = vmul.f32 %v1403, 0.25
        %v1416 = vmul.f32 %v1404, 0.25
        %v1417 = vmul.f32 %v1405, 0.25
        %v1418 = vadd.f32 %v1382, %v1406
        %v1419 = vadd.f32 %v1383, %v1407
        %v1420 = vadd.f32 %v1384, %v1408
        %v1421 = vadd.f32 %v1385, %v1409
        %v1422 = vadd.f32 %v1386, %v1410
        %v1423 = vadd.f32 %v1387, %v1411
        %v1424 = vadd.f32 %v1388, %v1412
        %v1425 = vadd.f32 %v1389, %v1413
        %v1426 = vadd.f32 %v1390, %v1414
        %v1427 = vadd.f32 %v1391, %v1415
        %v1428 = vadd.f32 %v1392, %v1416
        %v1429 = vadd.f32 %v1393, %v1417
        %v1430 = vadd.f32 %v1298, %v1370
        %v1431 = vadd.f32 %v1299, %v1371
        %v1432 = vadd.f32 %v1300, %v1372
        %v1433 = vadd.f32 %v1301, %v1373
        %v1434 = vadd.f32 %v1302, %v1374
        %v1435 = vadd.f32 %v1303, %v1375
        %v1436 = vadd.f32 %v1304, %v1376
        %v1437 = vadd.f32 %v1305, %v1377
        %v1438 = vadd.f32 %v1306, %v1378
        %v1439 = vadd.f32 %v1307, %v1379
        %v1440 = vadd.f32 %v1308, %v1380
        %v1441 = vadd.f32 %v1309, %v1381
        %v1442 = vmul.f32 %v1430, 0.05
        %v1443 = vmul.f32 %v1431, 0.05
        %v1444 = vmul.f32 %v1432, 0.05
        %v1445 = vmul.f32 %v1433, 0.05
        %v1446 = vmul.f32 %v1434, 0.05
        %v1447 = vmul.f32 %v1435, 0.05
        %v1448 = vmul.f32 %v1436, 0.05
        %v1449 = vmul.f32 %v1437, 0.05
        %v1450 = vmul.f32 %v1438, 0.05
        %v1451 = vmul.f32 %v1439, 0.05
        %v1452 = vmul.f32 %v1440, 0.05
        %v1453 = vmul.f32 %v1441, 0.05
        %v1454 = vadd.f32 %v1418, %v1442
        %v1455 = vadd.f32 %v1419, %v1443
        %v1456 = vadd.f32 %v1420, %v1444
        %v1457 = vadd.f32 %v1421, %v1445
        %v1458 = vadd.f32 %v1422, %v1446
        %v1459 = vadd.f32 %v1423, %v1447
        %v1460 = vadd.f32 %v1424, %v1448
        %v1461 = vadd.f32 %v1425, %v1449
        %v1462 = vadd.f32 %v1426, %v1450
        %v1463 = vadd.f32 %v1427, %v1451
        %v1464 = vadd.f32 %v1428, %v1452
        %v1465 = vadd.f32 %v1429, %v1453
        %v1466 = vrot.slane %v1454, 7
        %v1467 = vrot.slane %v1458, 7
        %v1468 = vrot.slane %v1462, 7
        %v1469 = vrot.slane %v1455, 7
        %v1470 = vrot.slane %v1459, 7
        %v1471 = vrot.slane %v1463, 7
        %v1472 = vrot.slane %v1456, 7
        %v1473 = vrot.slane %v1460, 7
        %v1474 = vrot.slane %v1464, 7
        %v1475 = vrot.slane %v1457, 7
        %v1476 = vrot.slane %v1461, 7
        %v1477 = vrot.slane %v1465, 7
        %v1478 = vsel %vm504, %v1472, %v1475
        %v1479 = vsel %vm504, %v1473, %v1476
        %v1480 = vsel %vm504, %v1474, %v1477
        %v1481 = vsel %vm504, %v1469, %v1472
        %v1482 = vsel %vm504, %v1470, %v1473
        %v1483 = vsel %vm504, %v1471, %v1474
        %v1484 = vsel %vm504, %v1466, %v1469
        %v1485 = vsel %vm504, %v1467, %v1470
        %v1486 = vsel %vm504, %v1468, %v1471
        %v1487 = vsel %vm504, %v1475, %v1466
        %v1488 = vsel %vm504, %v1476, %v1467
        %v1489 = vsel %vm504, %v1477, %v1468
        %v1490 = vsel %vm521, %v1487, %v1454
        %v1491 = vsel %vm522, %v1484, %v1455
        %v1492 = vsel %vm523, %v1481, %v1456
        %v1493 = vsel %vm524, %v1478, %v1457
        %v1494 = vsel %vm521, %v1488, %v1458
        %v1495 = vsel %vm522, %v1485, %v1459
        %v1496 = vsel %vm523, %v1482, %v1460
        %v1497 = vsel %vm524, %v1479, %v1461
        %v1498 = vsel %vm521, %v1489, %v1462
        %v1499 = vsel %vm522, %v1486, %v1463
        %v1500 = vsel %vm523, %v1483, %v1464
        %v1501 = vsel %vm524, %v1480, %v1465
        %v1502 = vrot.slane %v1490, 7
        %v1503 = vrot.slane %v1494, 7
        %v1504 = vrot.slane %v1498, 7
        %v1505 = vrot.slane %v1491, 7
        %v1506 = vrot.slane %v1495, 7
        %v1507 = vrot.slane %v1499, 7
        %v1508 = vrot.slane %v1492, 7
        %v1509 = vrot.slane %v1496, 7
        %v1510 = vrot.slane %v1500, 7
        %v1511 = vrot.slane %v1493, 7
        %v1512 = vrot.slane %v1497, 7
        %v1513 = vrot.slane %v1501, 7
        %v1514 = vsel %vm504, %v1508, %v1511
        %v1515 = vsel %vm504, %v1509, %v1512
        %v1516 = vsel %vm504, %v1510, %v1513
        %v1517 = vsel %vm504, %v1505, %v1508
        %v1518 = vsel %vm504, %v1506, %v1509
        %v1519 = vsel %vm504, %v1507, %v1510
        %v1520 = vsel %vm504, %v1502, %v1505
        %v1521 = vsel %vm504, %v1503, %v1506
        %v1522 = vsel %vm504, %v1504, %v1507
        %v1523 = vsel %vm504, %v1511, %v1502
        %v1524 = vsel %vm504, %v1512, %v1503
        %v1525 = vsel %vm504, %v1513, %v1504
        %v1526 = vsel %vm521, %v1523, %v1454
        %v1527 = vsel %vm522, %v1520, %v1455
        %v1528 = vsel %vm523, %v1517, %v1456
        %v1529 = vsel %vm524, %v1514, %v1457
        %v1530 = vsel %vm521, %v1524, %v1458
        %v1531 = vsel %vm522, %v1521, %v1459
        %v1532 = vsel %vm523, %v1518, %v1460
        %v1533 = vsel %vm524, %v1515, %v1461
        %v1534 = vsel %vm521, %v1525, %v1462
        %v1535 = vsel %vm522, %v1522, %v1463
        %v1536 = vsel %vm523, %v1519, %v1464
        %v1537 = vsel %vm524, %v1516, %v1465
        %v1538 = vrot.slane %v1454, 1
        %v1539 = vrot.slane %v1458, 1
        %v1540 = vrot.slane %v1462, 1
        %v1541 = vrot.slane %v1455, 1
        %v1542 = vrot.slane %v1459, 1
        %v1543 = vrot.slane %v1463, 1
        %v1544 = vrot.slane %v1456, 1
        %v1545 = vrot.slane %v1460, 1
        %v1546 = vrot.slane %v1464, 1
        %v1547 = vrot.slane %v1457, 1
        %v1548 = vrot.slane %v1461, 1
        %v1549 = vrot.slane %v1465, 1
        %v1550 = vsel %vm585, %v1544, %v1547
        %v1551 = vsel %vm585, %v1545, %v1548
        %v1552 = vsel %vm585, %v1546, %v1549
        %v1553 = vsel %vm585, %v1541, %v1544
        %v1554 = vsel %vm585, %v1542, %v1545
        %v1555 = vsel %vm585, %v1543, %v1546
        %v1556 = vsel %vm585, %v1538, %v1541
        %v1557 = vsel %vm585, %v1539, %v1542
        %v1558 = vsel %vm585, %v1540, %v1543
        %v1559 = vsel %vm585, %v1547, %v1538
        %v1560 = vsel %vm585, %v1548, %v1539
        %v1561 = vsel %vm585, %v1549, %v1540
        %v1562 = vsel %vm602, %v1556, %v1454
        %v1563 = vsel %vm603, %v1553, %v1455
        %v1564 = vsel %vm604, %v1550, %v1456
        %v1565 = vsel %vm605, %v1559, %v1457
        %v1566 = vsel %vm602, %v1557, %v1458
        %v1567 = vsel %vm603, %v1554, %v1459
        %v1568 = vsel %vm604, %v1551, %v1460
        %v1569 = vsel %vm605, %v1560, %v1461
        %v1570 = vsel %vm602, %v1558, %v1462
        %v1571 = vsel %vm603, %v1555, %v1463
        %v1572 = vsel %vm604, %v1552, %v1464
        %v1573 = vsel %vm605, %v1561, %v1465
        %v1574 = vrot.slane %v1562, 1
        %v1575 = vrot.slane %v1566, 1
        %v1576 = vrot.slane %v1570, 1
        %v1577 = vrot.slane %v1563, 1
        %v1578 = vrot.slane %v1567, 1
        %v1579 = vrot.slane %v1571, 1
        %v1580 = vrot.slane %v1564, 1
        %v1581 = vrot.slane %v1568, 1
        %v1582 = vrot.slane %v1572, 1
        %v1583 = vrot.slane %v1565, 1
        %v1584 = vrot.slane %v1569, 1
        %v1585 = vrot.slane %v1573, 1
        %v1586 = vsel %vm585, %v1580, %v1583
        %v1587 = vsel %vm585, %v1581, %v1584
        %v1588 = vsel %vm585, %v1582, %v1585
        %v1589 = vsel %vm585, %v1577, %v1580
        %v1590 = vsel %vm585, %v1578, %v1581
        %v1591 = vsel %vm585, %v1579, %v1582
        %v1592 = vsel %vm585, %v1574, %v1577
        %v1593 = vsel %vm585, %v1575, %v1578
        %v1594 = vsel %vm585, %v1576, %v1579
        %v1595 = vsel %vm585, %v1583, %v1574
        %v1596 = vsel %vm585, %v1584, %v1575
        %v1597 = vsel %vm585, %v1585, %v1576
        %v1598 = vsel %vm602, %v1592, %v1454
        %v1599 = vsel %vm603, %v1589, %v1455
        %v1600 = vsel %vm604, %v1586, %v1456
        %v1601 = vsel %vm605, %v1595, %v1457
        %v1602 = vsel %vm602, %v1593, %v1458
        %v1603 = vsel %vm603, %v1590, %v1459
        %v1604 = vsel %vm604, %v1587, %v1460
        %v1605 = vsel %vm605, %v1596, %v1461
        %v1606 = vsel %vm602, %v1594, %v1462
        %v1607 = vsel %vm603, %v1591, %v1463
        %v1608 = vsel %vm604, %v1588, %v1464
        %v1609 = vsel %vm605, %v1597, %v1465
        %v1610 = vmul.f32 %v1454, 0.4
        %v1611 = vmul.f32 %v1455, 0.4
        %v1612 = vmul.f32 %v1456, 0.4
        %v1613 = vmul.f32 %v1457, 0.4
        %v1614 = vmul.f32 %v1458, 0.4
        %v1615 = vmul.f32 %v1459, 0.4
        %v1616 = vmul.f32 %v1460, 0.4
        %v1617 = vmul.f32 %v1461, 0.4
        %v1618 = vmul.f32 %v1462, 0.4
        %v1619 = vmul.f32 %v1463, 0.4
        %v1620 = vmul.f32 %v1464, 0.4
        %v1621 = vmul.f32 %v1465, 0.4
        %v1622 = vadd.f32 %v1490, %v1562
        %v1623 = vadd.f32 %v1491, %v1563
        %v1624 = vadd.f32 %v1492, %v1564
        %v1625 = vadd.f32 %v1493, %v1565
        %v1626 = vadd.f32 %v1494, %v1566
        %v1627 = vadd.f32 %v1495, %v1567
        %v1628 = vadd.f32 %v1496, %v1568
        %v1629 = vadd.f32 %v1497, %v1569
        %v1630 = vadd.f32 %v1498, %v1570
        %v1631 = vadd.f32 %v1499, %v1571
        %v1632 = vadd.f32 %v1500, %v1572
        %v1633 = vadd.f32 %v1501, %v1573
        %v1634 = vmul.f32 %v1622, 0.25
        %v1635 = vmul.f32 %v1623, 0.25
        %v1636 = vmul.f32 %v1624, 0.25
        %v1637 = vmul.f32 %v1625, 0.25
        %v1638 = vmul.f32 %v1626, 0.25
        %v1639 = vmul.f32 %v1627, 0.25
        %v1640 = vmul.f32 %v1628, 0.25
        %v1641 = vmul.f32 %v1629, 0.25
        %v1642 = vmul.f32 %v1630, 0.25
        %v1643 = vmul.f32 %v1631, 0.25
        %v1644 = vmul.f32 %v1632, 0.25
        %v1645 = vmul.f32 %v1633, 0.25
        %v1646 = vadd.f32 %v1610, %v1634
        %v1647 = vadd.f32 %v1611, %v1635
        %v1648 = vadd.f32 %v1612, %v1636
        %v1649 = vadd.f32 %v1613, %v1637
        %v1650 = vadd.f32 %v1614, %v1638
        %v1651 = vadd.f32 %v1615, %v1639
        %v1652 = vadd.f32 %v1616, %v1640
        %v1653 = vadd.f32 %v1617, %v1641
        %v1654 = vadd.f32 %v1618, %v1642
        %v1655 = vadd.f32 %v1619, %v1643
        %v1656 = vadd.f32 %v1620, %v1644
        %v1657 = vadd.f32 %v1621, %v1645
        %v1658 = vadd.f32 %v1526, %v1598
        %v1659 = vadd.f32 %v1527, %v1599
        %v1660 = vadd.f32 %v1528, %v1600
        %v1661 = vadd.f32 %v1529, %v1601
        %v1662 = vadd.f32 %v1530, %v1602
        %v1663 = vadd.f32 %v1531, %v1603
        %v1664 = vadd.f32 %v1532, %v1604
        %v1665 = vadd.f32 %v1533, %v1605
        %v1666 = vadd.f32 %v1534, %v1606
        %v1667 = vadd.f32 %v1535, %v1607
        %v1668 = vadd.f32 %v1536, %v1608
        %v1669 = vadd.f32 %v1537, %v1609
        %v1670 = vmul.f32 %v1658, 0.05
        %v1671 = vmul.f32 %v1659, 0.05
        %v1672 = vmul.f32 %v1660, 0.05
        %v1673 = vmul.f32 %v1661, 0.05
        %v1674 = vmul.f32 %v1662, 0.05
        %v1675 = vmul.f32 %v1663, 0.05
        %v1676 = vmul.f32 %v1664, 0.05
        %v1677 = vmul.f32 %v1665, 0.05
        %v1678 = vmul.f32 %v1666, 0.05
        %v1679 = vmul.f32 %v1667, 0.05
        %v1680 = vmul.f32 %v1668, 0.05
        %v1681 = vmul.f32 %v1669, 0.05
        %v1682 = vadd.f32 %v1646, %v1670
        %v1683 = vadd.f32 %v1647, %v1671
        %v1684 = vadd.f32 %v1648, %v1672
        %v1685 = vadd.f32 %v1649, %v1673
        %v1686 = vadd.f32 %v1650, %v1674
        %v1687 = vadd.f32 %v1651, %v1675
        %v1688 = vadd.f32 %v1652, %v1676
        %v1689 = vadd.f32 %v1653, %v1677
        %v1690 = vadd.f32 %v1654, %v1678
        %v1691 = vadd.f32 %v1655, %v1679
        %v1692 = vadd.f32 %v1656, %v1680
        %v1693 = vadd.f32 %v1657, %v1681
        %v1694 = vmul.f32 %v1682, 4.0
        %v1695 = vmul.f32 %v1683, 4.0
        %v1696 = vmul.f32 %v1684, 4.0
        %v1697 = vmul.f32 %v1685, 4.0
        %v1698 = vmul.f32 %v1686, 4.0
        %v1699 = vmul.f32 %v1687, 4.0
        %v1700 = vmul.f32 %v1688, 4.0
        %v1701 = vmul.f32 %v1689, 4.0
        %v1702 = vmul.f32 %v1690, 4.0
        %v1703 = vmul.f32 %v1691, 4.0
        %v1704 = vmul.f32 %v1692, 4.0
        %v1705 = vmul.f32 %v1693, 4.0
        %v1706 = vsel %vm754, %v1694, 0.0
        %v1707 = vsel %vm755, %v1695, 0.0
        %v1708 = vsel %vm756, %v1696, 0.0
        %v1709 = vsel %vm757, %v1697, 0.0
        %v1710 = vsel %vm754, %v1698, 0.0
        %v1711 = vsel %vm755, %v1699, 0.0
        %v1712 = vsel %vm756, %v1700, 0.0
        %v1713 = vsel %vm757, %v1701, 0.0
        %v1714 = vsel %vm754, %v1702, 0.0
        %v1715 = vsel %vm755, %v1703, 0.0
        %v1716 = vsel %vm756, %v1704, 0.0
        %v1717 = vsel %vm757, %v1705, 0.0
        %1718 = vrot.lane.b32.xlu0 %v1706, 1
        %v1719 = vpop.permute.xlu0 %1718
        %1720 = vrot.lane.b32.xlu0 %v1707, 1
        %v1721 = vpop.permute.xlu0 %1720
        %1722 = vrot.lane.b32.xlu0 %v1708, 1
        %v1723 = vpop.permute.xlu0 %1722
        %1724 = vrot.lane.b32.xlu0 %v1709, 1
        %v1725 = vpop.permute.xlu0 %1724
        %1726 = vrot.lane.b32.xlu0 %v1710, 1
        %v1727 = vpop.permute.xlu0 %1726
        %1728 = vrot.lane.b32.xlu0 %v1711, 1
        %v1729 = vpop.permute.xlu0 %1728
        %1730 = vrot.lane.b32.xlu0 %v1712, 1
        %v1731 = vpop.permute.xlu0 %1730
        %1732 = vrot.lane.b32.xlu0 %v1713, 1
        %v1733 = vpop.permute.xlu0 %1732
        %1734 = vrot.lane.b32.xlu0 %v1714, 1
        %v1735 = vpop.permute.xlu0 %1734
        %1736 = vrot.lane.b32.xlu0 %v1715, 1
        %v1737 = vpop.permute.xlu0 %1736
        %1738 = vrot.lane.b32.xlu0 %v1716, 1
        %v1739 = vpop.permute.xlu0 %1738
        %1740 = vrot.lane.b32.xlu0 %v1717, 1
        %v1741 = vpop.permute.xlu0 %1740
        %v1742 = vsel %vm285, %v1719, %v1706
        %v1743 = vsel %vm285, %v1721, %v1707
        %v1744 = vsel %vm285, %v1723, %v1708
        %v1745 = vsel %vm285, %v1725, %v1709
        %v1746 = vsel %vm285, %v1727, %v1710
        %v1747 = vsel %vm285, %v1729, %v1711
        %v1748 = vsel %vm285, %v1731, %v1712
        %v1749 = vsel %vm285, %v1733, %v1713
        %v1750 = vsel %vm285, %v1735, %v1714
        %v1751 = vsel %vm285, %v1737, %v1715
        %v1752 = vsel %vm285, %v1739, %v1716
        %v1753 = vsel %vm285, %v1741, %v1717
        %1754 = vrot.lane.b32.xlu0 %v1742, 1
        %v1755 = vpop.permute.xlu0 %1754
        %1756 = vrot.lane.b32.xlu0 %v1743, 1
        %v1757 = vpop.permute.xlu0 %1756
        %1758 = vrot.lane.b32.xlu0 %v1744, 1
        %v1759 = vpop.permute.xlu0 %1758
        %1760 = vrot.lane.b32.xlu0 %v1745, 1
        %v1761 = vpop.permute.xlu0 %1760
        %1762 = vrot.lane.b32.xlu0 %v1746, 1
        %v1763 = vpop.permute.xlu0 %1762
        %1764 = vrot.lane.b32.xlu0 %v1747, 1
        %v1765 = vpop.permute.xlu0 %1764
        %1766 = vrot.lane.b32.xlu0 %v1748, 1
        %v1767 = vpop.permute.xlu0 %1766
        %1768 = vrot.lane.b32.xlu0 %v1749, 1
        %v1769 = vpop.permute.xlu0 %1768
        %1770 = vrot.lane.b32.xlu0 %v1750, 1
        %v1771 = vpop.permute.xlu0 %1770
        %1772 = vrot.lane.b32.xlu0 %v1751, 1
        %v1773 = vpop.permute.xlu0 %1772
        %1774 = vrot.lane.b32.xlu0 %v1752, 1
        %v1775 = vpop.permute.xlu0 %1774
        %1776 = vrot.lane.b32.xlu0 %v1753, 1
        %v1777 = vpop.permute.xlu0 %1776
        %v1778 = vsel %vm285, %v1755, %v1706
        %v1779 = vsel %vm285, %v1757, %v1707
        %v1780 = vsel %vm285, %v1759, %v1708
        %v1781 = vsel %vm285, %v1761, %v1709
        %v1782 = vsel %vm285, %v1763, %v1710
        %v1783 = vsel %vm285, %v1765, %v1711
        %v1784 = vsel %vm285, %v1767, %v1712
        %v1785 = vsel %vm285, %v1769, %v1713
        %v1786 = vsel %vm285, %v1771, %v1714
        %v1787 = vsel %vm285, %v1773, %v1715
        %v1788 = vsel %vm285, %v1775, %v1716
        %v1789 = vsel %vm285, %v1777, %v1717
        %1790 = vrot.lane.b32.xlu0 %v1706, 127
        %v1791 = vpop.permute.xlu0 %1790
        %1792 = vrot.lane.b32.xlu0 %v1707, 127
        %v1793 = vpop.permute.xlu0 %1792
        %1794 = vrot.lane.b32.xlu0 %v1708, 127
        %v1795 = vpop.permute.xlu0 %1794
        %1796 = vrot.lane.b32.xlu0 %v1709, 127
        %v1797 = vpop.permute.xlu0 %1796
        %1798 = vrot.lane.b32.xlu0 %v1710, 127
        %v1799 = vpop.permute.xlu0 %1798
        %1800 = vrot.lane.b32.xlu0 %v1711, 127
        %v1801 = vpop.permute.xlu0 %1800
        %1802 = vrot.lane.b32.xlu0 %v1712, 127
        %v1803 = vpop.permute.xlu0 %1802
        %1804 = vrot.lane.b32.xlu0 %v1713, 127
        %v1805 = vpop.permute.xlu0 %1804
        %1806 = vrot.lane.b32.xlu0 %v1714, 127
        %v1807 = vpop.permute.xlu0 %1806
        %1808 = vrot.lane.b32.xlu0 %v1715, 127
        %v1809 = vpop.permute.xlu0 %1808
        %1810 = vrot.lane.b32.xlu0 %v1716, 127
        %v1811 = vpop.permute.xlu0 %1810
        %1812 = vrot.lane.b32.xlu0 %v1717, 127
        %v1813 = vpop.permute.xlu0 %1812
        %v1814 = vsel %vm359, %v1791, %v1706
        %v1815 = vsel %vm359, %v1793, %v1707
        %v1816 = vsel %vm359, %v1795, %v1708
        %v1817 = vsel %vm359, %v1797, %v1709
        %v1818 = vsel %vm359, %v1799, %v1710
        %v1819 = vsel %vm359, %v1801, %v1711
        %v1820 = vsel %vm359, %v1803, %v1712
        %v1821 = vsel %vm359, %v1805, %v1713
        %v1822 = vsel %vm359, %v1807, %v1714
        %v1823 = vsel %vm359, %v1809, %v1715
        %v1824 = vsel %vm359, %v1811, %v1716
        %v1825 = vsel %vm359, %v1813, %v1717
        %1826 = vrot.lane.b32.xlu0 %v1814, 127
        %v1827 = vpop.permute.xlu0 %1826
        %1828 = vrot.lane.b32.xlu0 %v1815, 127
        %v1829 = vpop.permute.xlu0 %1828
        %1830 = vrot.lane.b32.xlu0 %v1816, 127
        %v1831 = vpop.permute.xlu0 %1830
        %1832 = vrot.lane.b32.xlu0 %v1817, 127
        %v1833 = vpop.permute.xlu0 %1832
        %1834 = vrot.lane.b32.xlu0 %v1818, 127
        %v1835 = vpop.permute.xlu0 %1834
        %1836 = vrot.lane.b32.xlu0 %v1819, 127
        %v1837 = vpop.permute.xlu0 %1836
        %1838 = vrot.lane.b32.xlu0 %v1820, 127
        %v1839 = vpop.permute.xlu0 %1838
        %1840 = vrot.lane.b32.xlu0 %v1821, 127
        %v1841 = vpop.permute.xlu0 %1840
        %1842 = vrot.lane.b32.xlu0 %v1822, 127
        %v1843 = vpop.permute.xlu0 %1842
        %1844 = vrot.lane.b32.xlu0 %v1823, 127
        %v1845 = vpop.permute.xlu0 %1844
        %1846 = vrot.lane.b32.xlu0 %v1824, 127
        %v1847 = vpop.permute.xlu0 %1846
        %1848 = vrot.lane.b32.xlu0 %v1825, 127
        %v1849 = vpop.permute.xlu0 %1848
        %v1850 = vsel %vm359, %v1827, %v1706
        %v1851 = vsel %vm359, %v1829, %v1707
        %v1852 = vsel %vm359, %v1831, %v1708
        %v1853 = vsel %vm359, %v1833, %v1709
        %v1854 = vsel %vm359, %v1835, %v1710
        %v1855 = vsel %vm359, %v1837, %v1711
        %v1856 = vsel %vm359, %v1839, %v1712
        %v1857 = vsel %vm359, %v1841, %v1713
        %v1858 = vsel %vm359, %v1843, %v1714
        %v1859 = vsel %vm359, %v1845, %v1715
        %v1860 = vsel %vm359, %v1847, %v1716
        %v1861 = vsel %vm359, %v1849, %v1717
        %v1862 = vmul.f32 %v1706, 0.4
        %v1863 = vmul.f32 %v1707, 0.4
        %v1864 = vmul.f32 %v1708, 0.4
        %v1865 = vmul.f32 %v1709, 0.4
        %v1866 = vmul.f32 %v1710, 0.4
        %v1867 = vmul.f32 %v1711, 0.4
        %v1868 = vmul.f32 %v1712, 0.4
        %v1869 = vmul.f32 %v1713, 0.4
        %v1870 = vmul.f32 %v1714, 0.4
        %v1871 = vmul.f32 %v1715, 0.4
        %v1872 = vmul.f32 %v1716, 0.4
        %v1873 = vmul.f32 %v1717, 0.4
        %v1874 = vadd.f32 %v1742, %v1814
        %v1875 = vadd.f32 %v1743, %v1815
        %v1876 = vadd.f32 %v1744, %v1816
        %v1877 = vadd.f32 %v1745, %v1817
        %v1878 = vadd.f32 %v1746, %v1818
        %v1879 = vadd.f32 %v1747, %v1819
        %v1880 = vadd.f32 %v1748, %v1820
        %v1881 = vadd.f32 %v1749, %v1821
        %v1882 = vadd.f32 %v1750, %v1822
        %v1883 = vadd.f32 %v1751, %v1823
        %v1884 = vadd.f32 %v1752, %v1824
        %v1885 = vadd.f32 %v1753, %v1825
        %v1886 = vmul.f32 %v1874, 0.25
        %v1887 = vmul.f32 %v1875, 0.25
        %v1888 = vmul.f32 %v1876, 0.25
        %v1889 = vmul.f32 %v1877, 0.25
        %v1890 = vmul.f32 %v1878, 0.25
        %v1891 = vmul.f32 %v1879, 0.25
        %v1892 = vmul.f32 %v1880, 0.25
        %v1893 = vmul.f32 %v1881, 0.25
        %v1894 = vmul.f32 %v1882, 0.25
        %v1895 = vmul.f32 %v1883, 0.25
        %v1896 = vmul.f32 %v1884, 0.25
        %v1897 = vmul.f32 %v1885, 0.25
        %v1898 = vadd.f32 %v1862, %v1886
        %v1899 = vadd.f32 %v1863, %v1887
        %v1900 = vadd.f32 %v1864, %v1888
        %v1901 = vadd.f32 %v1865, %v1889
        %v1902 = vadd.f32 %v1866, %v1890
        %v1903 = vadd.f32 %v1867, %v1891
        %v1904 = vadd.f32 %v1868, %v1892
        %v1905 = vadd.f32 %v1869, %v1893
        %v1906 = vadd.f32 %v1870, %v1894
        %v1907 = vadd.f32 %v1871, %v1895
        %v1908 = vadd.f32 %v1872, %v1896
        %v1909 = vadd.f32 %v1873, %v1897
        %v1910 = vadd.f32 %v1778, %v1850
        %v1911 = vadd.f32 %v1779, %v1851
        %v1912 = vadd.f32 %v1780, %v1852
        %v1913 = vadd.f32 %v1781, %v1853
        %v1914 = vadd.f32 %v1782, %v1854
        %v1915 = vadd.f32 %v1783, %v1855
        %v1916 = vadd.f32 %v1784, %v1856
        %v1917 = vadd.f32 %v1785, %v1857
        %v1918 = vadd.f32 %v1786, %v1858
        %v1919 = vadd.f32 %v1787, %v1859
        %v1920 = vadd.f32 %v1788, %v1860
        %v1921 = vadd.f32 %v1789, %v1861
        %v1922 = vmul.f32 %v1910, 0.05
        %v1923 = vmul.f32 %v1911, 0.05
        %v1924 = vmul.f32 %v1912, 0.05
        %v1925 = vmul.f32 %v1913, 0.05
        %v1926 = vmul.f32 %v1914, 0.05
        %v1927 = vmul.f32 %v1915, 0.05
        %v1928 = vmul.f32 %v1916, 0.05
        %v1929 = vmul.f32 %v1917, 0.05
        %v1930 = vmul.f32 %v1918, 0.05
        %v1931 = vmul.f32 %v1919, 0.05
        %v1932 = vmul.f32 %v1920, 0.05
        %v1933 = vmul.f32 %v1921, 0.05
        %v1934 = vadd.f32 %v1898, %v1922
        %v1935 = vadd.f32 %v1899, %v1923
        %v1936 = vadd.f32 %v1900, %v1924
        %v1937 = vadd.f32 %v1901, %v1925
        %v1938 = vadd.f32 %v1902, %v1926
        %v1939 = vadd.f32 %v1903, %v1927
        %v1940 = vadd.f32 %v1904, %v1928
        %v1941 = vadd.f32 %v1905, %v1929
        %v1942 = vadd.f32 %v1906, %v1930
        %v1943 = vadd.f32 %v1907, %v1931
        %v1944 = vadd.f32 %v1908, %v1932
        %v1945 = vadd.f32 %v1909, %v1933
        %v1946 = vrot.slane %v1934, 7
        %v1947 = vrot.slane %v1938, 7
        %v1948 = vrot.slane %v1942, 7
        %v1949 = vrot.slane %v1935, 7
        %v1950 = vrot.slane %v1939, 7
        %v1951 = vrot.slane %v1943, 7
        %v1952 = vrot.slane %v1936, 7
        %v1953 = vrot.slane %v1940, 7
        %v1954 = vrot.slane %v1944, 7
        %v1955 = vrot.slane %v1937, 7
        %v1956 = vrot.slane %v1941, 7
        %v1957 = vrot.slane %v1945, 7
        %v1958 = vsel %vm504, %v1952, %v1955
        %v1959 = vsel %vm504, %v1953, %v1956
        %v1960 = vsel %vm504, %v1954, %v1957
        %v1961 = vsel %vm504, %v1949, %v1952
        %v1962 = vsel %vm504, %v1950, %v1953
        %v1963 = vsel %vm504, %v1951, %v1954
        %v1964 = vsel %vm504, %v1946, %v1949
        %v1965 = vsel %vm504, %v1947, %v1950
        %v1966 = vsel %vm504, %v1948, %v1951
        %v1967 = vsel %vm504, %v1955, %v1946
        %v1968 = vsel %vm504, %v1956, %v1947
        %v1969 = vsel %vm504, %v1957, %v1948
        %v1970 = vsel %vm521, %v1967, %v1934
        %v1971 = vsel %vm522, %v1964, %v1935
        %v1972 = vsel %vm523, %v1961, %v1936
        %v1973 = vsel %vm524, %v1958, %v1937
        %v1974 = vsel %vm521, %v1968, %v1938
        %v1975 = vsel %vm522, %v1965, %v1939
        %v1976 = vsel %vm523, %v1962, %v1940
        %v1977 = vsel %vm524, %v1959, %v1941
        %v1978 = vsel %vm521, %v1969, %v1942
        %v1979 = vsel %vm522, %v1966, %v1943
        %v1980 = vsel %vm523, %v1963, %v1944
        %v1981 = vsel %vm524, %v1960, %v1945
        %v1982 = vrot.slane %v1970, 7
        %v1983 = vrot.slane %v1974, 7
        %v1984 = vrot.slane %v1978, 7
        %v1985 = vrot.slane %v1971, 7
        %v1986 = vrot.slane %v1975, 7
        %v1987 = vrot.slane %v1979, 7
        %v1988 = vrot.slane %v1972, 7
        %v1989 = vrot.slane %v1976, 7
        %v1990 = vrot.slane %v1980, 7
        %v1991 = vrot.slane %v1973, 7
        %v1992 = vrot.slane %v1977, 7
        %v1993 = vrot.slane %v1981, 7
        %v1994 = vsel %vm504, %v1988, %v1991
        %v1995 = vsel %vm504, %v1989, %v1992
        %v1996 = vsel %vm504, %v1990, %v1993
        %v1997 = vsel %vm504, %v1985, %v1988
        %v1998 = vsel %vm504, %v1986, %v1989
        %v1999 = vsel %vm504, %v1987, %v1990
        %v2000 = vsel %vm504, %v1982, %v1985
        %v2001 = vsel %vm504, %v1983, %v1986
        %v2002 = vsel %vm504, %v1984, %v1987
        %v2003 = vsel %vm504, %v1991, %v1982
        %v2004 = vsel %vm504, %v1992, %v1983
        %v2005 = vsel %vm504, %v1993, %v1984
        %v2006 = vsel %vm521, %v2003, %v1934
        %v2007 = vsel %vm522, %v2000, %v1935
        %v2008 = vsel %vm523, %v1997, %v1936
        %v2009 = vsel %vm524, %v1994, %v1937
        %v2010 = vsel %vm521, %v2004, %v1938
        %v2011 = vsel %vm522, %v2001, %v1939
        %v2012 = vsel %vm523, %v1998, %v1940
        %v2013 = vsel %vm524, %v1995, %v1941
        %v2014 = vsel %vm521, %v2005, %v1942
        %v2015 = vsel %vm522, %v2002, %v1943
        %v2016 = vsel %vm523, %v1999, %v1944
        %v2017 = vsel %vm524, %v1996, %v1945
        %v2018 = vrot.slane %v1934, 1
        %v2019 = vrot.slane %v1938, 1
        %v2020 = vrot.slane %v1942, 1
        %v2021 = vrot.slane %v1935, 1
        %v2022 = vrot.slane %v1939, 1
        %v2023 = vrot.slane %v1943, 1
        %v2024 = vrot.slane %v1936, 1
        %v2025 = vrot.slane %v1940, 1
        %v2026 = vrot.slane %v1944, 1
        %v2027 = vrot.slane %v1937, 1
        %v2028 = vrot.slane %v1941, 1
        %v2029 = vrot.slane %v1945, 1
        %v2030 = vsel %vm585, %v2024, %v2027
        %v2031 = vsel %vm585, %v2025, %v2028
        %v2032 = vsel %vm585, %v2026, %v2029
        %v2033 = vsel %vm585, %v2021, %v2024
        %v2034 = vsel %vm585, %v2022, %v2025
        %v2035 = vsel %vm585, %v2023, %v2026
        %v2036 = vsel %vm585, %v2018, %v2021
        %v2037 = vsel %vm585, %v2019, %v2022
        %v2038 = vsel %vm585, %v2020, %v2023
        %v2039 = vsel %vm585, %v2027, %v2018
        %v2040 = vsel %vm585, %v2028, %v2019
        %v2041 = vsel %vm585, %v2029, %v2020
        %v2042 = vsel %vm602, %v2036, %v1934
        %v2043 = vsel %vm603, %v2033, %v1935
        %v2044 = vsel %vm604, %v2030, %v1936
        %v2045 = vsel %vm605, %v2039, %v1937
        %v2046 = vsel %vm602, %v2037, %v1938
        %v2047 = vsel %vm603, %v2034, %v1939
        %v2048 = vsel %vm604, %v2031, %v1940
        %v2049 = vsel %vm605, %v2040, %v1941
        %v2050 = vsel %vm602, %v2038, %v1942
        %v2051 = vsel %vm603, %v2035, %v1943
        %v2052 = vsel %vm604, %v2032, %v1944
        %v2053 = vsel %vm605, %v2041, %v1945
        %v2054 = vrot.slane %v2042, 1
        %v2055 = vrot.slane %v2046, 1
        %v2056 = vrot.slane %v2050, 1
        %v2057 = vrot.slane %v2043, 1
        %v2058 = vrot.slane %v2047, 1
        %v2059 = vrot.slane %v2051, 1
        %v2060 = vrot.slane %v2044, 1
        %v2061 = vrot.slane %v2048, 1
        %v2062 = vrot.slane %v2052, 1
        %v2063 = vrot.slane %v2045, 1
        %v2064 = vrot.slane %v2049, 1
        %v2065 = vrot.slane %v2053, 1
        %v2066 = vsel %vm585, %v2060, %v2063
        %v2067 = vsel %vm585, %v2061, %v2064
        %v2068 = vsel %vm585, %v2062, %v2065
        %v2069 = vsel %vm585, %v2057, %v2060
        %v2070 = vsel %vm585, %v2058, %v2061
        %v2071 = vsel %vm585, %v2059, %v2062
        %v2072 = vsel %vm585, %v2054, %v2057
        %v2073 = vsel %vm585, %v2055, %v2058
        %v2074 = vsel %vm585, %v2056, %v2059
        %v2075 = vsel %vm585, %v2063, %v2054
        %v2076 = vsel %vm585, %v2064, %v2055
        %v2077 = vsel %vm585, %v2065, %v2056
        %v2078 = vsel %vm602, %v2072, %v1934
        %v2079 = vsel %vm603, %v2069, %v1935
        %v2080 = vsel %vm604, %v2066, %v1936
        %v2081 = vsel %vm605, %v2075, %v1937
        %v2082 = vsel %vm602, %v2073, %v1938
        %v2083 = vsel %vm603, %v2070, %v1939
        %v2084 = vsel %vm604, %v2067, %v1940
        %v2085 = vsel %vm605, %v2076, %v1941
        %v2086 = vsel %vm602, %v2074, %v1942
        %v2087 = vsel %vm603, %v2071, %v1943
        %v2088 = vsel %vm604, %v2068, %v1944
        %v2089 = vsel %vm605, %v2077, %v1945
        %v2090 = vmul.f32 %v1934, 0.4
        %v2091 = vmul.f32 %v1935, 0.4
        %v2092 = vmul.f32 %v1936, 0.4
        %v2093 = vmul.f32 %v1937, 0.4
        %v2094 = vmul.f32 %v1938, 0.4
        %v2095 = vmul.f32 %v1939, 0.4
        %v2096 = vmul.f32 %v1940, 0.4
        %v2097 = vmul.f32 %v1941, 0.4
        %v2098 = vmul.f32 %v1942, 0.4
        %v2099 = vmul.f32 %v1943, 0.4
        %v2100 = vmul.f32 %v1944, 0.4
        %v2101 = vmul.f32 %v1945, 0.4
        %v2102 = vadd.f32 %v1970, %v2042
        %v2103 = vadd.f32 %v1971, %v2043
        %v2104 = vadd.f32 %v1972, %v2044
        %v2105 = vadd.f32 %v1973, %v2045
        %v2106 = vadd.f32 %v1974, %v2046
        %v2107 = vadd.f32 %v1975, %v2047
        %v2108 = vadd.f32 %v1976, %v2048
        %v2109 = vadd.f32 %v1977, %v2049
        %v2110 = vadd.f32 %v1978, %v2050
        %v2111 = vadd.f32 %v1979, %v2051
        %v2112 = vadd.f32 %v1980, %v2052
        %v2113 = vadd.f32 %v1981, %v2053
        %v2114 = vmul.f32 %v2102, 0.25
        %v2115 = vmul.f32 %v2103, 0.25
        %v2116 = vmul.f32 %v2104, 0.25
        %v2117 = vmul.f32 %v2105, 0.25
        %v2118 = vmul.f32 %v2106, 0.25
        %v2119 = vmul.f32 %v2107, 0.25
        %v2120 = vmul.f32 %v2108, 0.25
        %v2121 = vmul.f32 %v2109, 0.25
        %v2122 = vmul.f32 %v2110, 0.25
        %v2123 = vmul.f32 %v2111, 0.25
        %v2124 = vmul.f32 %v2112, 0.25
        %v2125 = vmul.f32 %v2113, 0.25
        %v2126 = vadd.f32 %v2090, %v2114
        %v2127 = vadd.f32 %v2091, %v2115
        %v2128 = vadd.f32 %v2092, %v2116
        %v2129 = vadd.f32 %v2093, %v2117
        %v2130 = vadd.f32 %v2094, %v2118
        %v2131 = vadd.f32 %v2095, %v2119
        %v2132 = vadd.f32 %v2096, %v2120
        %v2133 = vadd.f32 %v2097, %v2121
        %v2134 = vadd.f32 %v2098, %v2122
        %v2135 = vadd.f32 %v2099, %v2123
        %v2136 = vadd.f32 %v2100, %v2124
        %v2137 = vadd.f32 %v2101, %v2125
        %v2138 = vadd.f32 %v2006, %v2078
        %v2139 = vadd.f32 %v2007, %v2079
        %v2140 = vadd.f32 %v2008, %v2080
        %v2141 = vadd.f32 %v2009, %v2081
        %v2142 = vadd.f32 %v2010, %v2082
        %v2143 = vadd.f32 %v2011, %v2083
        %v2144 = vadd.f32 %v2012, %v2084
        %v2145 = vadd.f32 %v2013, %v2085
        %v2146 = vadd.f32 %v2014, %v2086
        %v2147 = vadd.f32 %v2015, %v2087
        %v2148 = vadd.f32 %v2016, %v2088
        %v2149 = vadd.f32 %v2017, %v2089
        %v2150 = vmul.f32 %v2138, 0.05
        %v2151 = vmul.f32 %v2139, 0.05
        %v2152 = vmul.f32 %v2140, 0.05
        %v2153 = vmul.f32 %v2141, 0.05
        %v2154 = vmul.f32 %v2142, 0.05
        %v2155 = vmul.f32 %v2143, 0.05
        %v2156 = vmul.f32 %v2144, 0.05
        %v2157 = vmul.f32 %v2145, 0.05
        %v2158 = vmul.f32 %v2146, 0.05
        %v2159 = vmul.f32 %v2147, 0.05
        %v2160 = vmul.f32 %v2148, 0.05
        %v2161 = vmul.f32 %v2149, 0.05
        %v2162 = vadd.f32 %v2126, %v2150
        %v2163 = vadd.f32 %v2127, %v2151
        %v2164 = vadd.f32 %v2128, %v2152
        %v2165 = vadd.f32 %v2129, %v2153
        %v2166 = vadd.f32 %v2130, %v2154
        %v2167 = vadd.f32 %v2131, %v2155
        %v2168 = vadd.f32 %v2132, %v2156
        %v2169 = vadd.f32 %v2133, %v2157
        %v2170 = vadd.f32 %v2134, %v2158
        %v2171 = vadd.f32 %v2135, %v2159
        %v2172 = vadd.f32 %v2136, %v2160
        %v2173 = vadd.f32 %v2137, %v2161
        %v2174 = vsub.f32 %v248, %v2162
        %v2175 = vsub.f32 %v249, %v2163
        %v2176 = vsub.f32 %v250, %v2164
        %v2177 = vsub.f32 %v251, %v2165
        %v2178 = vsub.f32 %v252, %v2166
        %v2179 = vsub.f32 %v253, %v2167
        %v2180 = vsub.f32 %v254, %v2168
        %v2181 = vsub.f32 %v255, %v2169
        %v2182 = vsub.f32 %v256, %v2170
        %v2183 = vsub.f32 %v257, %v2171
        %v2184 = vsub.f32 %v258, %v2172
        %v2185 = vsub.f32 %v259, %v2173
        %v2186 = vsub.f32 %v1226, %v2174
        %v2187 = vsub.f32 %v1227, %v2175
        %v2188 = vsub.f32 %v1228, %v2176
        %v2189 = vsub.f32 %v1229, %v2177
        %v2190 = vsub.f32 %v1230, %v2178
        %v2191 = vsub.f32 %v1231, %v2179
        %v2192 = vsub.f32 %v1232, %v2180
        %v2193 = vsub.f32 %v1233, %v2181
        %v2194 = vsub.f32 %v1234, %v2182
        %v2195 = vsub.f32 %v1235, %v2183
        %v2196 = vsub.f32 %v1236, %v2184
        %v2197 = vsub.f32 %v1237, %v2185
        %v2198 = vand.u32 2147483647, %v2186
        %v2199 = vand.u32 2147483647, %v2187
        %v2200 = vand.u32 2147483647, %v2188
        %v2201 = vand.u32 2147483647, %v2189
        %v2202 = vand.u32 2147483647, %v2190
        %v2203 = vand.u32 2147483647, %v2191
        %v2204 = vand.u32 2147483647, %v2192
        %v2205 = vand.u32 2147483647, %v2193
        %v2206 = vand.u32 2147483647, %v2194
        %v2207 = vand.u32 2147483647, %v2195
        %v2208 = vand.u32 2147483647, %v2196
        %v2209 = vand.u32 2147483647, %v2197
        %v2210 = vadd.f32 %v2198, %v2202
        %v2211 = vadd.f32 %v2210, %v2206
        %v2212 = vadd.f32 %v2199, %v2203
        %v2213 = vadd.f32 %v2212, %v2207
        %v2214 = vadd.f32 %v2200, %v2204
        %v2215 = vadd.f32 %v2214, %v2208
        %v2216 = vadd.f32 %v2201, %v2205
        %v2217 = vadd.f32 %v2216, %v2209
        %v2218 = vadd.f32 %v2211, %v2213
        %v2219 = vadd.f32 %v2218, %v2215
        %v2220 = vadd.f32 %v2219, %v2217
        %v2221 = vrot.slane %v2220, 4
        %v2222 = vadd.f32 %v2220, %v2221
        %v2223 = vrot.slane %v2222, 2
        %v2224 = vadd.f32 %v2222, %v2223
        %v2225 = vrot.slane %v2224, 1
        %v2226 = vadd.f32 %v2224, %v2225
        %2227 = vst [vmem:[%s202] sm:$0x1] %v2226
        %s2228 = sand.u32 %s82, 1
        %s2229 = scalar_lea.sflag [#allocation4], %s2228
        %s2230 = sand.u32 %s82, 1
        %s2231 = scalar_lea.vmem [#allocation7], %s2230
        // Predicated region
        $region37: #{tpu_custom_call.1} parent=27 // pred_check
          %p2232 = pneg %p92
        $region38: #{tpu_custom_call.1} parent=27 // pred_check_branch
          %2234 = sbr.rel (%p2232) target = $region40
        $region39: #{tpu_custom_call.1} parent=27 // pred_region
          %s2236 = ssub.s32 16, 16
          %2237 = vsyncadd %s2229, %s2236
          %s2238 = smul.addr %s22, 16
          %s2239 = scalar_lea.hbm %s2, %s2238
          %s2241 = sshll.u32 %s2231, 4
          %s2242 = int_to_ptr.vmem [resolvable:$true] %s2241
          %2244 = dma.vmem_to_hbm [thread:$0]  %s2242, 16, %s2239, %s2229
        $region40: #{tpu_custom_call.1} parent=27 // pred_fallthru
          _
      $region28: #{tpu_custom_call.1} parent=5 // pred_fallthru
        _
      %p2245 = scmp.le.s32.totalorder 2, %s17
      // Predicated region
      $region41: #{tpu_custom_call.1} parent=5 // pred_check
        %p2246 = pneg %p2245
      $region42: #{tpu_custom_call.1} parent=5 // pred_check_branch
        %2248 = sbr.rel (%p2246) target = $region44
      $region43: #{tpu_custom_call.1} parent=5 // pred_region
        %s2249 = ssub.s32 %s17, 2
        // Predicated region
        $region45: #{tpu_custom_call.1} parent=43 // pred_check
          %p2250 = pneg %p98
        $region46: #{tpu_custom_call.1} parent=43 // pred_check_branch
          %2252 = sbr.rel (%p2250) target = $region48
        $region47: #{tpu_custom_call.1} parent=43 // pred_region
          %s2253 = sand.u32 %s83, 1
          %s2254 = scalar_lea.sflag [#allocation4], %s2253
          %s2255 = sand.u32 %s83, 1
          %s2256 = scalar_lea.vmem [#allocation7], %s2255
          %2257 = dma.done %s2254, 16
        $region48: #{tpu_custom_call.1} parent=43 // pred_fallthru
          _
      $region44: #{tpu_custom_call.1} parent=5 // pred_fallthru
        _
    $region6: #{tpu_custom_call.1} parent=1 // loop_footer
      %s21 = sadd.s32 1, %s17
    $region7: #{tpu_custom_call.1} parent=1 // loop_footer_branch
      %16 = sbr.rel target = $region3
    $region8: #{tpu_custom_call.1} parent=1 // loop_exit
      _
    %2258 = vsyncpa [#allocation3], 1
    %s2259 = scalar_lea.sflag [#allocation3], 1
    %2260 = vsyncpa %s2259, 1
    %2261 = vsyncpa [#allocation6], 1
    %s2262 = scalar_lea.sflag [#allocation6], 1
    %2263 = vsyncpa %s2262, 1
    %2264 = vsyncpa [#allocation4], 1
    %s2265 = scalar_lea.sflag [#allocation4], 1
    %2266 = vsyncpa %s2265, 1

</llo_original>
